<compile_context>
chip_gen: v6e
topology: v6e:2x2x1
jax: 0.10.0
libtpu: 0.0.40
codegen_flags: <defaults>
</compile_context>

<pallas_src>
import functools

import jax
import jax.numpy as jnp
from jax.experimental import pallas as pl
from jax.experimental.pallas import tpu as pltpu

BN_EPS = 1e-5


def _zero_map(ndim):
    return lambda i: (0,) * ndim


def _double_ds_kernel(x_ref, ntop_ref, nbot_ref,
                      dw1_ref, p1_ref, g1_ref, be1_ref,
                      dw2_ref, p2_ref, g2_ref, be2_ref, a_ref,
                      o_ref, *, n, h, w, cin, cout):
    """Fused DoubleDSConv forward on lane-dense 2-D tiles.

    x_ref    : (n*h, w*cout)  input rows; lane = w_pixel*cin + ch, pad lanes are zero
    ntop/nbot: (n*h, 1)       1.0 everywhere except 0.0 on each image's top/bottom row
    dw*_ref  : (3, 3, w*cout) depthwise taps tiled along w (block-1 pad lanes zeroed)
    p*_ref   : (w*cout, w*cout) pointwise 1x1 as kron(I_w, pw); block-1 extra rows zero
    g*/be*   : (1, w*cout)    BN gamma / beta tiled along w
    a_ref    : (w*cout, w*cout) channel-sum matrix A[i,j] = (i % cout == j % cout)
    o_ref    : (n*h, w*cout)  lane-dense output (unmasked full-width stores)
    """
    nh = n * h
    wc = w * cout
    inv_cnt = 1.0 / (n * h * w)

    # Lane index per element (for the W-edge masks) and a 2-row selector for the
    # fused BN-stats stack; both are trace-time constants built from iota + compare.
    lane = jax.lax.broadcasted_iota(jnp.int32, (nh, wc), 1)
    two = jax.lax.broadcasted_iota(jnp.int32, (2, wc), 0)
    ntop = ntop_ref[...]          # (nh, 1)
    nbot = nbot_ref[...]          # (nh, 1)

    def ds_block(x, dw_ref, p_ref, g_ref, b_ref, c):
        dww = dw_ref[...]         # (3, 3, wc)

        # --- W halo: full-vreg XLU lane rotations + edge masks (no misaligned slices) ---
        left = jnp.where(lane >= c, pltpu.roll(x, c, axis=1), 0.0)              # pixel w-1
        right = jnp.where(lane < (w - 1) * c, pltpu.roll(x, wc - c, axis=1), 0.0)  # pixel w+1

        # --- H halo: sublane rotations + zeroed image-border rows ---
        def up(v):                # row r-1 (zero on each image's top row)
            return pltpu.roll(v, 1, axis=0) * ntop

        def down(v):              # row r+1 (zero on each image's bottom row)
            return pltpu.roll(v, nh - 1, axis=0) * nbot

        # --- depthwise 3x3: 9 shifted multiply-adds on the VPU ---
        acc = None
        for kw, v in enumerate((left, x, right)):
            for kh, s in enumerate((up(v), v, down(v))):
                t = s * dww[kh, kw, :]
                acc = t if acc is None else acc + t

        # --- pointwise 1x1: one lane-dense MXU matmul against kron(I_w, pw).
        #     Bias adds dropped: training-mode BN cancels per-channel constants exactly. ---
        y = jnp.dot(acc, p_ref[...], preferred_element_type=jnp.float32)

        # --- BatchNorm2d (training batch stats over N,H,W) + ReLU.
        #     One-pass sum / sum-of-squares, stacked into an M=2 tile (broadcast-select,
        #     no concat) and reduced with a single dot against the channel-sum matrix. ---
        csum = jnp.sum(y, axis=0, keepdims=True)            # (1, wc)
        csumsq = jnp.sum(y * y, axis=0, keepdims=True)      # (1, wc)
        stats = jnp.where(two == 0, csum, csumsq)           # (2, wc)
        stats = jnp.dot(stats, a_ref[...],
                        preferred_element_type=jnp.float32) * inv_cnt
        mean = stats[0:1, :]
        # One-pass E[x^2]-E[x]^2 variance (clamped); fine at the 5e-2 tolerance.
        var = jnp.maximum(stats[1:2, :] - mean * mean, 0.0)
        scale = g_ref[...] * jax.lax.rsqrt(var + BN_EPS)     # rsqrt -> EUP slot
        shift = b_ref[...] - mean * scale
        return jnp.maximum(y * scale + shift, 0.0)           # fused BN + ReLU

    # Block 1 from the input tile; block 2's intermediate stays in vregs (no scratch).
    y1 = ds_block(x_ref[...], dw1_ref, p1_ref, g1_ref, be1_ref, cin)
    y2 = ds_block(y1, dw2_ref, p2_ref, g2_ref, be2_ref, cout)
    o_ref[...] = y2.astype(o_ref.dtype)


def prepare_params(params, *, n, h, w):
    """One-time preprocessing (hoisted out of the jitted forward path).

    Builds the lane-tiled taps, kron-expanded pointwise matrices, channel-sum matrix,
    BN affine rows and the image-border row masks as device-ready arrays.
    """
    f32 = jnp.float32
    cin = params["dw1_w"].shape[-1]
    cout = params["pw1_b"].shape[0]
    if cin > cout:
        raise NotImplementedError("prepare_params assumes in_channels <= out_channels")
    wc = w * cout
    wcin = w * cin
    eye_w = jnp.eye(w, dtype=f32)

    dw1 = jnp.pad(jnp.tile(params["dw1_w"].astype(f32), (1, 1, w)),
                  ((0, 0), (0, 0), (0, wc - wcin)))                      # (3,3,wc)
    dw2 = jnp.tile(params["dw2_w"].astype(f32), (1, 1, w))               # (3,3,wc)

    p1 = jnp.zeros((wc, wc), f32).at[:wcin, :].set(
        jnp.kron(eye_w, params["pw1_w"].astype(f32)))                    # (wc,wc), rows>=wcin zero
    p2 = jnp.kron(eye_w, params["pw2_w"].astype(f32))                    # (wc,wc)
    a_mat = jnp.kron(jnp.ones((w, w), f32), jnp.eye(cout, dtype=f32))    # (wc,wc)

    g1 = jnp.tile(params["bn1_g"].astype(f32), w).reshape(1, wc)
    be1 = jnp.tile(params["bn1_b"].astype(f32), w).reshape(1, wc)
    g2 = jnp.tile(params["bn2_g"].astype(f32), w).reshape(1, wc)
    be2 = jnp.tile(params["bn2_b"].astype(f32), w).reshape(1, wc)

    rows = jnp.arange(n * h) % h
    ntop = (rows != 0).astype(f32).reshape(n * h, 1)       # zero on image-top rows
    nbot = (rows != h - 1).astype(f32).reshape(n * h, 1)   # zero on image-bottom rows

    return dict(dw1=dw1, p1=p1, g1=g1, be1=be1, dw2=dw2, p2=p2, g2=g2, be2=be2,
                a=a_mat, ntop=ntop, nbot=nbot)


@jax.jit
def double_ds_conv(x_nchw, prepped):
    """DoubleDSConv forward. NCHW in / NCHW out (PyTorch convention)."""
    n, cin, h, w = x_nchw.shape
    wc = prepped["p2"].shape[0]
    cout = wc // w
    nh = n * h
    f32 = jnp.float32

    # Boundary layout work only: NCHW -> lane-dense (N*H, W*Cin), zero-padded to wc lanes
    # so the lane rolls stay full-vreg and pad lanes are well defined (killed by the zero
    # rows of the extended pointwise matrix).
    x2d = jnp.transpose(x_nchw, (0, 2, 3, 1)).reshape(nh, w * cin).astype(f32)
    x2d = jnp.pad(x2d, ((0, 0), (0, wc - w * cin)))

    args = (x2d, prepped["ntop"], prepped["nbot"],
            prepped["dw1"], prepped["p1"], prepped["g1"], prepped["be1"],
            prepped["dw2"], prepped["p2"], prepped["g2"], prepped["be2"],
            prepped["a"])
    in_specs = [pl.BlockSpec(a.shape, _zero_map(a.ndim)) for a in args]

    kernel = functools.partial(_double_ds_kernel, n=n, h=h, w=w, cin=cin, cout=cout)

    out2d = pl.pallas_call(
        kernel,
        out_shape=jax.ShapeDtypeStruct((nh, wc), f32),
        grid=(1,),
        in_specs=in_specs,
        out_specs=pl.BlockSpec((nh, wc), _zero_map(2)),
        compiler_params=pltpu.CompilerParams(
            dimension_semantics=("arbitrary",),
            vmem_limit_bytes=32 * 1024 * 1024,
        ),
    )(*args)

    # lane-dense (n*h, w*cout) -> NCHW at the API boundary
    return jnp.transpose(out2d.reshape(n, h, w, cout), (0, 3, 1, 2))


def init_params(key, in_channels, out_channels):
    """Deterministic synthetic parameters with PyTorch-equivalent shapes."""
    ks = jax.random.split(key, 12)
    dw1_w_pt = 0.1 * jax.random.normal(ks[0], (in_channels, 1, 3, 3), jnp.float32)
    pw1_w_pt = 0.1 * jax.random.normal(ks[1], (out_channels, in_channels, 1, 1), jnp.float32)
    dw2_w_pt = 0.1 * jax.random.normal(ks[2], (out_channels, 1, 3, 3), jnp.float32)
    pw2_w_pt = 0.1 * jax.random.normal(ks[3], (out_channels, out_channels, 1, 1), jnp.float32)
    return dict(
        dw1_w=jnp.transpose(dw1_w_pt[:, 0], (1, 2, 0)),          # (3,3,Cin)
        dw1_b=0.1 * jax.random.normal(ks[4], (in_channels,), jnp.float32),
        pw1_w=jnp.transpose(pw1_w_pt[:, :, 0, 0], (1, 0)),       # (Cin,Cout)
        pw1_b=0.1 * jax.random.normal(ks[5], (out_channels,), jnp.float32),
        bn1_g=1.0 + 0.1 * jax.random.normal(ks[6], (out_channels,), jnp.float32),
        bn1_b=0.1 * jax.random.normal(ks[7], (out_channels,), jnp.float32),
        dw2_w=jnp.transpose(dw2_w_pt[:, 0], (1, 2, 0)),          # (3,3,Cout)
        dw2_b=0.1 * jax.random.normal(ks[8], (out_channels,), jnp.float32),
        pw2_w=jnp.transpose(pw2_w_pt[:, :, 0, 0], (1, 0)),       # (Cout,Cout)
        pw2_b=0.1 * jax.random.normal(ks[9], (out_channels,), jnp.float32),
        bn2_g=1.0 + 0.1 * jax.random.normal(ks[10], (out_channels,), jnp.float32),
        bn2_b=0.1 * jax.random.normal(ks[11], (out_channels,), jnp.float32),
    )


def reference_double_ds_conv(x_nchw, params):
    """Pure-JAX (XLA) reference with PyTorch DoubleDSConv training-mode semantics."""
    hi = jax.lax.Precision.HIGHEST

    def block(x, dw_w, dw_b, pw_w, pw_b, g, b):
        c = x.shape[-1]
        y = jax.lax.conv_general_dilated(
            x, dw_w[:, :, None, :], window_strides=(1, 1), padding="SAME",
            dimension_numbers=("NHWC", "HWIO", "NHWC"),
            feature_group_count=c, precision=hi) + dw_b
        y = jnp.einsum("nhwc,cd->nhwd", y, pw_w, precision=hi) + pw_b
        mean = jnp.mean(y, axis=(0, 1, 2))
        var = jnp.mean((y - mean) ** 2, axis=(0, 1, 2))
        y = (y - mean) * jax.lax.rsqrt(var + BN_EPS) * g + b
        return jnp.maximum(y, 0.0)

    x = jnp.transpose(x_nchw, (0, 2, 3, 1))
    y = block(x, params["dw1_w"], params["dw1_b"], params["pw1_w"], params["pw1_b"],
              params["bn1_g"], params["bn1_b"])
    y = block(y, params["dw2_w"], params["dw2_b"], params["pw2_w"], params["pw2_b"],
              params["bn2_g"], params["bn2_b"])
    return jnp.transpose(y, (0, 3, 1, 2))


if __name__ == "__main__":
    key = jax.random.PRNGKey(0)
    k_x, k_p = jax.random.split(key)

    N, C_IN, C_OUT, H, W = 2, 4, 8, 16, 16
    x = jax.random.normal(k_x, (N, C_IN, H, W), jnp.float32)
    params = init_params(k_p, C_IN, C_OUT)

    prepped = prepare_params(params, n=N, h=H, w=W)   # one-time, outside the jitted path

    out = jax.block_until_ready(double_ds_conv(x, prepped))
    assert out.shape == (N, C_OUT, H, W), out.shape

    ref = jax.block_until_ready(reference_double_ds_conv(x, params))
    max_err = float(jnp.max(jnp.abs(out - ref)))
    assert max_err < 5e-2, f"max abs error vs reference: {max_err}"
    print("KERNEL_OK")
</pallas_src>

<mosaic_0001>
module attributes {stable_mosaic.version = 11 : i64} {
  func.func @_double_ds_kernel(%arg0: i32, %arg1: memref<32x128xf32, #tpu.memory_space<vmem>>, %arg2: memref<32x1xf32, #tpu.memory_space<vmem>>, %arg3: memref<32x1xf32, #tpu.memory_space<vmem>>, %arg4: memref<3x3x128xf32, #tpu.memory_space<vmem>>, %arg5: memref<128x128xf32, #tpu.memory_space<vmem>>, %arg6: memref<1x128xf32, #tpu.memory_space<vmem>>, %arg7: memref<1x128xf32, #tpu.memory_space<vmem>>, %arg8: memref<3x3x128xf32, #tpu.memory_space<vmem>>, %arg9: memref<128x128xf32, #tpu.memory_space<vmem>>, %arg10: memref<1x128xf32, #tpu.memory_space<vmem>>, %arg11: memref<1x128xf32, #tpu.memory_space<vmem>>, %arg12: memref<128x128xf32, #tpu.memory_space<vmem>>, %arg13: memref<32x128xf32, #tpu.memory_space<vmem>>) attributes {dimension_semantics = [#tpu.dimension_semantics<arbitrary>], iteration_bounds = array<i64: 1>, scalar_prefetch = 0 : i64, scratch_operands = 0 : i64, tpu.core_type = #tpu.core_type<tc>, window_params = [{pipeline_mode = #tpu.pipeline_mode<synchronous>, transform_indices = @transform_0, window_bounds = array<i64: 32, 128>}, {pipeline_mode = #tpu.pipeline_mode<synchronous>, transform_indices = @transform_1, window_bounds = array<i64: 32, 1>}, {pipeline_mode = #tpu.pipeline_mode<synchronous>, transform_indices = @transform_2, window_bounds = array<i64: 32, 1>}, {pipeline_mode = #tpu.pipeline_mode<synchronous>, transform_indices = @transform_3, window_bounds = array<i64: 3, 3, 128>}, {pipeline_mode = #tpu.pipeline_mode<synchronous>, transform_indices = @transform_4, window_bounds = array<i64: 128, 128>}, {pipeline_mode = #tpu.pipeline_mode<synchronous>, transform_indices = @transform_5, window_bounds = array<i64: 1, 128>}, {pipeline_mode = #tpu.pipeline_mode<synchronous>, transform_indices = @transform_6, window_bounds = array<i64: 1, 128>}, {pipeline_mode = #tpu.pipeline_mode<synchronous>, transform_indices = @transform_7, window_bounds = array<i64: 3, 3, 128>}, {pipeline_mode = #tpu.pipeline_mode<synchronous>, transform_indices = @transform_8, window_bounds = array<i64: 128, 128>}, {pipeline_mode = #tpu.pipeline_mode<synchronous>, transform_indices = @transform_9, window_bounds = array<i64: 1, 128>}, {pipeline_mode = #tpu.pipeline_mode<synchronous>, transform_indices = @transform_10, window_bounds = array<i64: 1, 128>}, {pipeline_mode = #tpu.pipeline_mode<synchronous>, transform_indices = @transform_11, window_bounds = array<i64: 128, 128>}, {pipeline_mode = #tpu.pipeline_mode<synchronous>, transform_indices = @transform_12, window_bounds = array<i64: 32, 128>}]} {
    %0 = tpu.iota {dimensions = array<i32: 1>} : vector<32x128xi32>
    %1 = tpu.iota {dimensions = array<i32: 0>} : vector<2x128xi32>
    %c0 = arith.constant 0 : index
    %c0_0 = arith.constant 0 : index
    %2 = vector.load %arg2[%c0, %c0_0] : memref<32x1xf32, #tpu.memory_space<vmem>>, vector<32x1xf32>
    %c0_1 = arith.constant 0 : index
    %c0_2 = arith.constant 0 : index
    %3 = vector.load %arg3[%c0_1, %c0_2] : memref<32x1xf32, #tpu.memory_space<vmem>>, vector<32x1xf32>
    %c0_3 = arith.constant 0 : index
    %c0_4 = arith.constant 0 : index
    %4 = vector.load %arg1[%c0_3, %c0_4] : memref<32x128xf32, #tpu.memory_space<vmem>>, vector<32x128xf32>
    %c0_5 = arith.constant 0 : index
    %c0_6 = arith.constant 0 : index
    %c0_7 = arith.constant 0 : index
    %5 = vector.load %arg4[%c0_5, %c0_6, %c0_7] : memref<3x3x128xf32, #tpu.memory_space<vmem>>, vector<3x3x128xf32>
    %c4_i32 = arith.constant 4 : i32
    %6 = vector.broadcast %c4_i32 : i32 to vector<32x128xi32>
    %7 = arith.cmpi sge, %0, %6 : vector<32x128xi32>
    %c4_i32_8 = arith.constant 4 : i32
    %8 = tpu.dynamic_rotate %4 by %c4_i32_8 dim 1 : vector<32x128xf32>, i32 -> vector<32x128xf32>
    %cst = arith.constant 0.000000e+00 : f32
    %9 = vector.broadcast %cst : f32 to vector<32x128xf32>
    %10 = arith.select %7, %8, %9 : vector<32x128xi1>, vector<32x128xf32>
    %c60_i32 = arith.constant 60 : i32
    %11 = vector.broadcast %c60_i32 : i32 to vector<32x128xi32>
    %12 = arith.cmpi slt, %0, %11 : vector<32x128xi32>
    %c124_i32 = arith.constant 124 : i32
    %13 = tpu.dynamic_rotate %4 by %c124_i32 dim 1 : vector<32x128xf32>, i32 -> vector<32x128xf32>
    %cst_9 = arith.constant 0.000000e+00 : f32
    %14 = vector.broadcast %cst_9 : f32 to vector<32x128xf32>
    %15 = arith.select %12, %13, %14 : vector<32x128xi1>, vector<32x128xf32>
    %c1_i32 = arith.constant 1 : i32
    %16 = tpu.dynamic_rotate %10 by %c1_i32 dim 0 : vector<32x128xf32>, i32 -> vector<32x128xf32>
    %17 = vector.broadcast %2 : vector<32x1xf32> to vector<32x128xf32>
    %18 = arith.mulf %16, %17 : vector<32x128xf32>
    %c31_i32 = arith.constant 31 : i32
    %19 = tpu.dynamic_rotate %10 by %c31_i32 dim 0 : vector<32x128xf32>, i32 -> vector<32x128xf32>
    %20 = vector.broadcast %3 : vector<32x1xf32> to vector<32x128xf32>
    %21 = arith.mulf %19, %20 : vector<32x128xf32>
    %22 = vector.extract_strided_slice %5 {offsets = [0, 0, 0], sizes = [1, 1, 128], strides = [1, 1, 1]} : vector<3x3x128xf32> to vector<1x1x128xf32>
    %23 = vector.shape_cast %22 : vector<1x1x128xf32> to vector<128xf32>
    %24 = vector.shape_cast %23 : vector<128xf32> to vector<1x128xf32>
    %25 = vector.broadcast %24 : vector<1x128xf32> to vector<32x128xf32>
    %26 = arith.mulf %18, %25 : vector<32x128xf32>
    %27 = vector.extract_strided_slice %5 {offsets = [1, 0, 0], sizes = [1, 1, 128], strides = [1, 1, 1]} : vector<3x3x128xf32> to vector<1x1x128xf32>
    %28 = vector.shape_cast %27 : vector<1x1x128xf32> to vector<128xf32>
    %29 = vector.shape_cast %28 : vector<128xf32> to vector<1x128xf32>
    %30 = vector.broadcast %29 : vector<1x128xf32> to vector<32x128xf32>
    %31 = arith.mulf %10, %30 : vector<32x128xf32>
    %32 = arith.addf %26, %31 : vector<32x128xf32>
    %33 = vector.extract_strided_slice %5 {offsets = [2, 0, 0], sizes = [1, 1, 128], strides = [1, 1, 1]} : vector<3x3x128xf32> to vector<1x1x128xf32>
    %34 = vector.shape_cast %33 : vector<1x1x128xf32> to vector<128xf32>
    %35 = vector.shape_cast %34 : vector<128xf32> to vector<1x128xf32>
    %36 = vector.broadcast %35 : vector<1x128xf32> to vector<32x128xf32>
    %37 = arith.mulf %21, %36 : vector<32x128xf32>
    %38 = arith.addf %32, %37 : vector<32x128xf32>
    %c1_i32_10 = arith.constant 1 : i32
    %39 = tpu.dynamic_rotate %4 by %c1_i32_10 dim 0 : vector<32x128xf32>, i32 -> vector<32x128xf32>
    %40 = vector.broadcast %2 : vector<32x1xf32> to vector<32x128xf32>
    %41 = arith.mulf %39, %40 : vector<32x128xf32>
    %c31_i32_11 = arith.constant 31 : i32
    %42 = tpu.dynamic_rotate %4 by %c31_i32_11 dim 0 : vector<32x128xf32>, i32 -> vector<32x128xf32>
    %43 = vector.broadcast %3 : vector<32x1xf32> to vector<32x128xf32>
    %44 = arith.mulf %42, %43 : vector<32x128xf32>
    %45 = vector.extract_strided_slice %5 {offsets = [0, 1, 0], sizes = [1, 1, 128], strides = [1, 1, 1]} : vector<3x3x128xf32> to vector<1x1x128xf32>
    %46 = vector.shape_cast %45 : vector<1x1x128xf32> to vector<128xf32>
    %47 = vector.shape_cast %46 : vector<128xf32> to vector<1x128xf32>
    %48 = vector.broadcast %47 : vector<1x128xf32> to vector<32x128xf32>
    %49 = arith.mulf %41, %48 : vector<32x128xf32>
    %50 = arith.addf %38, %49 : vector<32x128xf32>
    %51 = vector.extract_strided_slice %5 {offsets = [1, 1, 0], sizes = [1, 1, 128], strides = [1, 1, 1]} : vector<3x3x128xf32> to vector<1x1x128xf32>
    %52 = vector.shape_cast %51 : vector<1x1x128xf32> to vector<128xf32>
    %53 = vector.shape_cast %52 : vector<128xf32> to vector<1x128xf32>
    %54 = vector.broadcast %53 : vector<1x128xf32> to vector<32x128xf32>
    %55 = arith.mulf %4, %54 : vector<32x128xf32>
    %56 = arith.addf %50, %55 : vector<32x128xf32>
    %57 = vector.extract_strided_slice %5 {offsets = [2, 1, 0], sizes = [1, 1, 128], strides = [1, 1, 1]} : vector<3x3x128xf32> to vector<1x1x128xf32>
    %58 = vector.shape_cast %57 : vector<1x1x128xf32> to vector<128xf32>
    %59 = vector.shape_cast %58 : vector<128xf32> to vector<1x128xf32>
    %60 = vector.broadcast %59 : vector<1x128xf32> to vector<32x128xf32>
    %61 = arith.mulf %44, %60 : vector<32x128xf32>
    %62 = arith.addf %56, %61 : vector<32x128xf32>
    %c1_i32_12 = arith.constant 1 : i32
    %63 = tpu.dynamic_rotate %15 by %c1_i32_12 dim 0 : vector<32x128xf32>, i32 -> vector<32x128xf32>
    %64 = vector.broadcast %2 : vector<32x1xf32> to vector<32x128xf32>
    %65 = arith.mulf %63, %64 : vector<32x128xf32>
    %c31_i32_13 = arith.constant 31 : i32
    %66 = tpu.dynamic_rotate %15 by %c31_i32_13 dim 0 : vector<32x128xf32>, i32 -> vector<32x128xf32>
    %67 = vector.broadcast %3 : vector<32x1xf32> to vector<32x128xf32>
    %68 = arith.mulf %66, %67 : vector<32x128xf32>
    %69 = vector.extract_strided_slice %5 {offsets = [0, 2, 0], sizes = [1, 1, 128], strides = [1, 1, 1]} : vector<3x3x128xf32> to vector<1x1x128xf32>
    %70 = vector.shape_cast %69 : vector<1x1x128xf32> to vector<128xf32>
    %71 = vector.shape_cast %70 : vector<128xf32> to vector<1x128xf32>
    %72 = vector.broadcast %71 : vector<1x128xf32> to vector<32x128xf32>
    %73 = arith.mulf %65, %72 : vector<32x128xf32>
    %74 = arith.addf %62, %73 : vector<32x128xf32>
    %75 = vector.extract_strided_slice %5 {offsets = [1, 2, 0], sizes = [1, 1, 128], strides = [1, 1, 1]} : vector<3x3x128xf32> to vector<1x1x128xf32>
    %76 = vector.shape_cast %75 : vector<1x1x128xf32> to vector<128xf32>
    %77 = vector.shape_cast %76 : vector<128xf32> to vector<1x128xf32>
    %78 = vector.broadcast %77 : vector<1x128xf32> to vector<32x128xf32>
    %79 = arith.mulf %15, %78 : vector<32x128xf32>
    %80 = arith.addf %74, %79 : vector<32x128xf32>
    %81 = vector.extract_strided_slice %5 {offsets = [2, 2, 0], sizes = [1, 1, 128], strides = [1, 1, 1]} : vector<3x3x128xf32> to vector<1x1x128xf32>
    %82 = vector.shape_cast %81 : vector<1x1x128xf32> to vector<128xf32>
    %83 = vector.shape_cast %82 : vector<128xf32> to vector<1x128xf32>
    %84 = vector.broadcast %83 : vector<1x128xf32> to vector<32x128xf32>
    %85 = arith.mulf %68, %84 : vector<32x128xf32>
    %86 = arith.addf %80, %85 : vector<32x128xf32>
    %c0_14 = arith.constant 0 : index
    %c0_15 = arith.constant 0 : index
    %87 = vector.load %arg5[%c0_14, %c0_15] : memref<128x128xf32, #tpu.memory_space<vmem>>, vector<128x128xf32>
    %cst_16 = arith.constant dense<0.000000e+00> : vector<32x128xf32>
    %88 = tpu.matmul %86, %87, %cst_16 {dimension_numbers = #tpu.dot_dimension_numbers<[1], [0], [0], [1], [0, 0, 1, 1], [], []>} : vector<32x128xf32>, vector<128x128xf32>, vector<32x128xf32> -> vector<32x128xf32>
    %cst_17 = arith.constant dense<0.000000e+00> : vector<128xf32>
    %89 = vector.multi_reduction <add>, %88, %cst_17 [0] : vector<32x128xf32> to vector<128xf32>
    %90 = vector.shape_cast %89 : vector<128xf32> to vector<1x128xf32>
    %91 = arith.mulf %88, %88 : vector<32x128xf32>
    %cst_18 = arith.constant dense<0.000000e+00> : vector<128xf32>
    %92 = vector.multi_reduction <add>, %91, %cst_18 [0] : vector<32x128xf32> to vector<128xf32>
    %93 = vector.shape_cast %92 : vector<128xf32> to vector<1x128xf32>
    %c0_i32 = arith.constant 0 : i32
    %94 = vector.broadcast %c0_i32 : i32 to vector<2x128xi32>
    %95 = arith.cmpi eq, %1, %94 : vector<2x128xi32>
    %96 = vector.shape_cast %90 : vector<1x128xf32> to vector<1x128xf32>
    %97 = vector.broadcast %96 : vector<1x128xf32> to vector<2x128xf32>
    %98 = vector.shape_cast %93 : vector<1x128xf32> to vector<1x128xf32>
    %99 = vector.broadcast %98 : vector<1x128xf32> to vector<2x128xf32>
    %100 = arith.select %95, %97, %99 : vector<2x128xi1>, vector<2x128xf32>
    %c0_19 = arith.constant 0 : index
    %c0_20 = arith.constant 0 : index
    %101 = vector.load %arg12[%c0_19, %c0_20] : memref<128x128xf32, #tpu.memory_space<vmem>>, vector<128x128xf32>
    %cst_21 = arith.constant dense<0.000000e+00> : vector<2x128xf32>
    %102 = tpu.matmul %100, %101, %cst_21 {dimension_numbers = #tpu.dot_dimension_numbers<[1], [0], [0], [1], [0, 0, 1, 1], [], []>} : vector<2x128xf32>, vector<128x128xf32>, vector<2x128xf32> -> vector<2x128xf32>
    %cst_22 = arith.constant 0.001953125 : f32
    %103 = vector.broadcast %cst_22 : f32 to vector<2x128xf32>
    %104 = arith.mulf %102, %103 : vector<2x128xf32>
    %105 = vector.extract_strided_slice %104 {offsets = [0, 0], sizes = [1, 128], strides = [1, 1]} : vector<2x128xf32> to vector<1x128xf32>
    %106 = vector.extract_strided_slice %104 {offsets = [1, 0], sizes = [1, 128], strides = [1, 1]} : vector<2x128xf32> to vector<1x128xf32>
    %107 = arith.mulf %105, %105 : vector<1x128xf32>
    %108 = arith.subf %106, %107 : vector<1x128xf32>
    %cst_23 = arith.constant 0.000000e+00 : f32
    %109 = vector.broadcast %cst_23 : f32 to vector<1x128xf32>
    %110 = arith.maximumf %108, %109 : vector<1x128xf32>
    %c0_24 = arith.constant 0 : index
    %c0_25 = arith.constant 0 : index
    %111 = vector.load %arg6[%c0_24, %c0_25] : memref<1x128xf32, #tpu.memory_space<vmem>>, vector<1x128xf32>
    %cst_26 = arith.constant 9.99999974E-6 : f32
    %112 = vector.broadcast %cst_26 : f32 to vector<1x128xf32>
    %113 = arith.addf %110, %112 : vector<1x128xf32>
    %114 = math.rsqrt %113 : vector<1x128xf32>
    %115 = arith.mulf %111, %114 : vector<1x128xf32>
    %c0_27 = arith.constant 0 : index
    %c0_28 = arith.constant 0 : index
    %116 = vector.load %arg7[%c0_27, %c0_28] : memref<1x128xf32, #tpu.memory_space<vmem>>, vector<1x128xf32>
    %117 = arith.mulf %105, %115 : vector<1x128xf32>
    %118 = arith.subf %116, %117 : vector<1x128xf32>
    %119 = vector.broadcast %115 : vector<1x128xf32> to vector<32x128xf32>
    %120 = arith.mulf %88, %119 : vector<32x128xf32>
    %121 = vector.broadcast %118 : vector<1x128xf32> to vector<32x128xf32>
    %122 = arith.addf %120, %121 : vector<32x128xf32>
    %cst_29 = arith.constant 0.000000e+00 : f32
    %123 = vector.broadcast %cst_29 : f32 to vector<32x128xf32>
    %124 = arith.maximumf %122, %123 : vector<32x128xf32>
    %c0_30 = arith.constant 0 : index
    %c0_31 = arith.constant 0 : index
    %c0_32 = arith.constant 0 : index
    %125 = vector.load %arg8[%c0_30, %c0_31, %c0_32] : memref<3x3x128xf32, #tpu.memory_space<vmem>>, vector<3x3x128xf32>
    %c8_i32 = arith.constant 8 : i32
    %126 = vector.broadcast %c8_i32 : i32 to vector<32x128xi32>
    %127 = arith.cmpi sge, %0, %126 : vector<32x128xi32>
    %c8_i32_33 = arith.constant 8 : i32
    %128 = tpu.dynamic_rotate %124 by %c8_i32_33 dim 1 : vector<32x128xf32>, i32 -> vector<32x128xf32>
    %cst_34 = arith.constant 0.000000e+00 : f32
    %129 = vector.broadcast %cst_34 : f32 to vector<32x128xf32>
    %130 = arith.select %127, %128, %129 : vector<32x128xi1>, vector<32x128xf32>
    %c120_i32 = arith.constant 120 : i32
    %131 = vector.broadcast %c120_i32 : i32 to vector<32x128xi32>
    %132 = arith.cmpi slt, %0, %131 : vector<32x128xi32>
    %c120_i32_35 = arith.constant 120 : i32
    %133 = tpu.dynamic_rotate %124 by %c120_i32_35 dim 1 : vector<32x128xf32>, i32 -> vector<32x128xf32>
    %cst_36 = arith.constant 0.000000e+00 : f32
    %134 = vector.broadcast %cst_36 : f32 to vector<32x128xf32>
    %135 = arith.select %132, %133, %134 : vector<32x128xi1>, vector<32x128xf32>
    %c1_i32_37 = arith.constant 1 : i32
    %136 = tpu.dynamic_rotate %130 by %c1_i32_37 dim 0 : vector<32x128xf32>, i32 -> vector<32x128xf32>
    %137 = vector.broadcast %2 : vector<32x1xf32> to vector<32x128xf32>
    %138 = arith.mulf %136, %137 : vector<32x128xf32>
    %c31_i32_38 = arith.constant 31 : i32
    %139 = tpu.dynamic_rotate %130 by %c31_i32_38 dim 0 : vector<32x128xf32>, i32 -> vector<32x128xf32>
    %140 = vector.broadcast %3 : vector<32x1xf32> to vector<32x128xf32>
    %141 = arith.mulf %139, %140 : vector<32x128xf32>
    %142 = vector.extract_strided_slice %125 {offsets = [0, 0, 0], sizes = [1, 1, 128], strides = [1, 1, 1]} : vector<3x3x128xf32> to vector<1x1x128xf32>
    %143 = vector.shape_cast %142 : vector<1x1x128xf32> to vector<128xf32>
    %144 = vector.shape_cast %143 : vector<128xf32> to vector<1x128xf32>
    %145 = vector.broadcast %144 : vector<1x128xf32> to vector<32x128xf32>
    %146 = arith.mulf %138, %145 : vector<32x128xf32>
    %147 = vector.extract_strided_slice %125 {offsets = [1, 0, 0], sizes = [1, 1, 128], strides = [1, 1, 1]} : vector<3x3x128xf32> to vector<1x1x128xf32>
    %148 = vector.shape_cast %147 : vector<1x1x128xf32> to vector<128xf32>
    %149 = vector.shape_cast %148 : vector<128xf32> to vector<1x128xf32>
    %150 = vector.broadcast %149 : vector<1x128xf32> to vector<32x128xf32>
    %151 = arith.mulf %130, %150 : vector<32x128xf32>
    %152 = arith.addf %146, %151 : vector<32x128xf32>
    %153 = vector.extract_strided_slice %125 {offsets = [2, 0, 0], sizes = [1, 1, 128], strides = [1, 1, 1]} : vector<3x3x128xf32> to vector<1x1x128xf32>
    %154 = vector.shape_cast %153 : vector<1x1x128xf32> to vector<128xf32>
    %155 = vector.shape_cast %154 : vector<128xf32> to vector<1x128xf32>
    %156 = vector.broadcast %155 : vector<1x128xf32> to vector<32x128xf32>
    %157 = arith.mulf %141, %156 : vector<32x128xf32>
    %158 = arith.addf %152, %157 : vector<32x128xf32>
    %c1_i32_39 = arith.constant 1 : i32
    %159 = tpu.dynamic_rotate %124 by %c1_i32_39 dim 0 : vector<32x128xf32>, i32 -> vector<32x128xf32>
    %160 = vector.broadcast %2 : vector<32x1xf32> to vector<32x128xf32>
    %161 = arith.mulf %159, %160 : vector<32x128xf32>
    %c31_i32_40 = arith.constant 31 : i32
    %162 = tpu.dynamic_rotate %124 by %c31_i32_40 dim 0 : vector<32x128xf32>, i32 -> vector<32x128xf32>
    %163 = vector.broadcast %3 : vector<32x1xf32> to vector<32x128xf32>
    %164 = arith.mulf %162, %163 : vector<32x128xf32>
    %165 = vector.extract_strided_slice %125 {offsets = [0, 1, 0], sizes = [1, 1, 128], strides = [1, 1, 1]} : vector<3x3x128xf32> to vector<1x1x128xf32>
    %166 = vector.shape_cast %165 : vector<1x1x128xf32> to vector<128xf32>
    %167 = vector.shape_cast %166 : vector<128xf32> to vector<1x128xf32>
    %168 = vector.broadcast %167 : vector<1x128xf32> to vector<32x128xf32>
    %169 = arith.mulf %161, %168 : vector<32x128xf32>
    %170 = arith.addf %158, %169 : vector<32x128xf32>
    %171 = vector.extract_strided_slice %125 {offsets = [1, 1, 0], sizes = [1, 1, 128], strides = [1, 1, 1]} : vector<3x3x128xf32> to vector<1x1x128xf32>
    %172 = vector.shape_cast %171 : vector<1x1x128xf32> to vector<128xf32>
    %173 = vector.shape_cast %172 : vector<128xf32> to vector<1x128xf32>
    %174 = vector.broadcast %173 : vector<1x128xf32> to vector<32x128xf32>
    %175 = arith.mulf %124, %174 : vector<32x128xf32>
    %176 = arith.addf %170, %175 : vector<32x128xf32>
    %177 = vector.extract_strided_slice %125 {offsets = [2, 1, 0], sizes = [1, 1, 128], strides = [1, 1, 1]} : vector<3x3x128xf32> to vector<1x1x128xf32>
    %178 = vector.shape_cast %177 : vector<1x1x128xf32> to vector<128xf32>
    %179 = vector.shape_cast %178 : vector<128xf32> to vector<1x128xf32>
    %180 = vector.broadcast %179 : vector<1x128xf32> to vector<32x128xf32>
    %181 = arith.mulf %164, %180 : vector<32x128xf32>
    %182 = arith.addf %176, %181 : vector<32x128xf32>
    %c1_i32_41 = arith.constant 1 : i32
    %183 = tpu.dynamic_rotate %135 by %c1_i32_41 dim 0 : vector<32x128xf32>, i32 -> vector<32x128xf32>
    %184 = vector.broadcast %2 : vector<32x1xf32> to vector<32x128xf32>
    %185 = arith.mulf %183, %184 : vector<32x128xf32>
    %c31_i32_42 = arith.constant 31 : i32
    %186 = tpu.dynamic_rotate %135 by %c31_i32_42 dim 0 : vector<32x128xf32>, i32 -> vector<32x128xf32>
    %187 = vector.broadcast %3 : vector<32x1xf32> to vector<32x128xf32>
    %188 = arith.mulf %186, %187 : vector<32x128xf32>
    %189 = vector.extract_strided_slice %125 {offsets = [0, 2, 0], sizes = [1, 1, 128], strides = [1, 1, 1]} : vector<3x3x128xf32> to vector<1x1x128xf32>
    %190 = vector.shape_cast %189 : vector<1x1x128xf32> to vector<128xf32>
    %191 = vector.shape_cast %190 : vector<128xf32> to vector<1x128xf32>
    %192 = vector.broadcast %191 : vector<1x128xf32> to vector<32x128xf32>
    %193 = arith.mulf %185, %192 : vector<32x128xf32>
    %194 = arith.addf %182, %193 : vector<32x128xf32>
    %195 = vector.extract_strided_slice %125 {offsets = [1, 2, 0], sizes = [1, 1, 128], strides = [1, 1, 1]} : vector<3x3x128xf32> to vector<1x1x128xf32>
    %196 = vector.shape_cast %195 : vector<1x1x128xf32> to vector<128xf32>
    %197 = vector.shape_cast %196 : vector<128xf32> to vector<1x128xf32>
    %198 = vector.broadcast %197 : vector<1x128xf32> to vector<32x128xf32>
    %199 = arith.mulf %135, %198 : vector<32x128xf32>
    %200 = arith.addf %194, %199 : vector<32x128xf32>
    %201 = vector.extract_strided_slice %125 {offsets = [2, 2, 0], sizes = [1, 1, 128], strides = [1, 1, 1]} : vector<3x3x128xf32> to vector<1x1x128xf32>
    %202 = vector.shape_cast %201 : vector<1x1x128xf32> to vector<128xf32>
    %203 = vector.shape_cast %202 : vector<128xf32> to vector<1x128xf32>
    %204 = vector.broadcast %203 : vector<1x128xf32> to vector<32x128xf32>
    %205 = arith.mulf %188, %204 : vector<32x128xf32>
    %206 = arith.addf %200, %205 : vector<32x128xf32>
    %c0_43 = arith.constant 0 : index
    %c0_44 = arith.constant 0 : index
    %207 = vector.load %arg9[%c0_43, %c0_44] : memref<128x128xf32, #tpu.memory_space<vmem>>, vector<128x128xf32>
    %cst_45 = arith.constant dense<0.000000e+00> : vector<32x128xf32>
    %208 = tpu.matmul %206, %207, %cst_45 {dimension_numbers = #tpu.dot_dimension_numbers<[1], [0], [0], [1], [0, 0, 1, 1], [], []>} : vector<32x128xf32>, vector<128x128xf32>, vector<32x128xf32> -> vector<32x128xf32>
    %cst_46 = arith.constant dense<0.000000e+00> : vector<128xf32>
    %209 = vector.multi_reduction <add>, %208, %cst_46 [0] : vector<32x128xf32> to vector<128xf32>
    %210 = vector.shape_cast %209 : vector<128xf32> to vector<1x128xf32>
    %211 = arith.mulf %208, %208 : vector<32x128xf32>
    %cst_47 = arith.constant dense<0.000000e+00> : vector<128xf32>
    %212 = vector.multi_reduction <add>, %211, %cst_47 [0] : vector<32x128xf32> to vector<128xf32>
    %213 = vector.shape_cast %212 : vector<128xf32> to vector<1x128xf32>
    %c0_i32_48 = arith.constant 0 : i32
    %214 = vector.broadcast %c0_i32_48 : i32 to vector<2x128xi32>
    %215 = arith.cmpi eq, %1, %214 : vector<2x128xi32>
    %216 = vector.shape_cast %210 : vector<1x128xf32> to vector<1x128xf32>
    %217 = vector.broadcast %216 : vector<1x128xf32> to vector<2x128xf32>
    %218 = vector.shape_cast %213 : vector<1x128xf32> to vector<1x128xf32>
    %219 = vector.broadcast %218 : vector<1x128xf32> to vector<2x128xf32>
    %220 = arith.select %215, %217, %219 : vector<2x128xi1>, vector<2x128xf32>
    %c0_49 = arith.constant 0 : index
    %c0_50 = arith.constant 0 : index
    %221 = vector.load %arg12[%c0_49, %c0_50] : memref<128x128xf32, #tpu.memory_space<vmem>>, vector<128x128xf32>
    %cst_51 = arith.constant dense<0.000000e+00> : vector<2x128xf32>
    %222 = tpu.matmul %220, %221, %cst_51 {dimension_numbers = #tpu.dot_dimension_numbers<[1], [0], [0], [1], [0, 0, 1, 1], [], []>} : vector<2x128xf32>, vector<128x128xf32>, vector<2x128xf32> -> vector<2x128xf32>
    %cst_52 = arith.constant 0.001953125 : f32
    %223 = vector.broadcast %cst_52 : f32 to vector<2x128xf32>
    %224 = arith.mulf %222, %223 : vector<2x128xf32>
    %225 = vector.extract_strided_slice %224 {offsets = [0, 0], sizes = [1, 128], strides = [1, 1]} : vector<2x128xf32> to vector<1x128xf32>
    %226 = vector.extract_strided_slice %224 {offsets = [1, 0], sizes = [1, 128], strides = [1, 1]} : vector<2x128xf32> to vector<1x128xf32>
    %227 = arith.mulf %225, %225 : vector<1x128xf32>
    %228 = arith.subf %226, %227 : vector<1x128xf32>
    %cst_53 = arith.constant 0.000000e+00 : f32
    %229 = vector.broadcast %cst_53 : f32 to vector<1x128xf32>
    %230 = arith.maximumf %228, %229 : vector<1x128xf32>
    %c0_54 = arith.constant 0 : index
    %c0_55 = arith.constant 0 : index
    %231 = vector.load %arg10[%c0_54, %c0_55] : memref<1x128xf32, #tpu.memory_space<vmem>>, vector<1x128xf32>
    %cst_56 = arith.constant 9.99999974E-6 : f32
    %232 = vector.broadcast %cst_56 : f32 to vector<1x128xf32>
    %233 = arith.addf %230, %232 : vector<1x128xf32>
    %234 = math.rsqrt %233 : vector<1x128xf32>
    %235 = arith.mulf %231, %234 : vector<1x128xf32>
    %c0_57 = arith.constant 0 : index
    %c0_58 = arith.constant 0 : index
    %236 = vector.load %arg11[%c0_57, %c0_58] : memref<1x128xf32, #tpu.memory_space<vmem>>, vector<1x128xf32>
    %237 = arith.mulf %225, %235 : vector<1x128xf32>
    %238 = arith.subf %236, %237 : vector<1x128xf32>
    %239 = vector.broadcast %235 : vector<1x128xf32> to vector<32x128xf32>
    %240 = arith.mulf %208, %239 : vector<32x128xf32>
    %241 = vector.broadcast %238 : vector<1x128xf32> to vector<32x128xf32>
    %242 = arith.addf %240, %241 : vector<32x128xf32>
    %cst_59 = arith.constant 0.000000e+00 : f32
    %243 = vector.broadcast %cst_59 : f32 to vector<32x128xf32>
    %244 = arith.maximumf %242, %243 : vector<32x128xf32>
    %c0_60 = arith.constant 0 : index
    %c0_61 = arith.constant 0 : index
    %245 = vector.load %arg13[%c0_60, %c0_61] : memref<32x128xf32, #tpu.memory_space<vmem>>, vector<32x128xf32>
    tpu.vector_store %arg13[%c0_60, %c0_61], %244 {strides = array<i32>} : memref<32x128xf32, #tpu.memory_space<vmem>>, vector<32x128xf32>,
    return
  }
  func.func @transform_0(%arg0: i32) -> (i32, i32) {
    %c0_i32 = arith.constant 0 : i32
    %c0_i32_0 = arith.constant 0 : i32
    %c0_i32_1 = arith.constant 0 : i32
    return %c0_i32, %c0_i32_0 : i32, i32
  }
  func.func @transform_1(%arg0: i32) -> (i32, i32) {
    %c0_i32 = arith.constant 0 : i32
    %c0_i32_0 = arith.constant 0 : i32
    %c0_i32_1 = arith.constant 0 : i32
    return %c0_i32, %c0_i32_0 : i32, i32
  }
  func.func @transform_2(%arg0: i32) -> (i32, i32) {
    %c0_i32 = arith.constant 0 : i32
    %c0_i32_0 = arith.constant 0 : i32
    %c0_i32_1 = arith.constant 0 : i32
    return %c0_i32, %c0_i32_0 : i32, i32
  }
  func.func @transform_3(%arg0: i32) -> (i32, i32, i32) {
    %c0_i32 = arith.constant 0 : i32
    %c0_i32_0 = arith.constant 0 : i32
    %c0_i32_1 = arith.constant 0 : i32
    %c0_i32_2 = arith.constant 0 : i32
    return %c0_i32, %c0_i32_0, %c0_i32_1 : i32, i32, i32
  }
  func.func @transform_4(%arg0: i32) -> (i32, i32) {
    %c0_i32 = arith.constant 0 : i32
    %c0_i32_0 = arith.constant 0 : i32
    %c0_i32_1 = arith.constant 0 : i32
    return %c0_i32, %c0_i32_0 : i32, i32
  }
  func.func @transform_5(%arg0: i32) -> (i32, i32) {
    %c0_i32 = arith.constant 0 : i32
    %c0_i32_0 = arith.constant 0 : i32
    %c0_i32_1 = arith.constant 0 : i32
    return %c0_i32, %c0_i32_0 : i32, i32
  }
  func.func @transform_6(%arg0: i32) -> (i32, i32) {
    %c0_i32 = arith.constant 0 : i32
    %c0_i32_0 = arith.constant 0 : i32
    %c0_i32_1 = arith.constant 0 : i32
    return %c0_i32, %c0_i32_0 : i32, i32
  }
  func.func @transform_7(%arg0: i32) -> (i32, i32, i32) {
    %c0_i32 = arith.constant 0 : i32
    %c0_i32_0 = arith.constant 0 : i32
    %c0_i32_1 = arith.constant 0 : i32
    %c0_i32_2 = arith.constant 0 : i32
    return %c0_i32, %c0_i32_0, %c0_i32_1 : i32, i32, i32
  }
  func.func @transform_8(%arg0: i32) -> (i32, i32) {
    %c0_i32 = arith.constant 0 : i32
    %c0_i32_0 = arith.constant 0 : i32
    %c0_i32_1 = arith.constant 0 : i32
    return %c0_i32, %c0_i32_0 : i32, i32
  }
  func.func @transform_9(%arg0: i32) -> (i32, i32) {
    %c0_i32 = arith.constant 0 : i32
    %c0_i32_0 = arith.constant 0 : i32
    %c0_i32_1 = arith.constant 0 : i32
    return %c0_i32, %c0_i32_0 : i32, i32
  }
  func.func @transform_10(%arg0: i32) -> (i32, i32) {
    %c0_i32 = arith.constant 0 : i32
    %c0_i32_0 = arith.constant 0 : i32
    %c0_i32_1 = arith.constant 0 : i32
    return %c0_i32, %c0_i32_0 : i32, i32
  }
  func.func @transform_11(%arg0: i32) -> (i32, i32) {
    %c0_i32 = arith.constant 0 : i32
    %c0_i32_0 = arith.constant 0 : i32
    %c0_i32_1 = arith.constant 0 : i32
    return %c0_i32, %c0_i32_0 : i32, i32
  }
  func.func @transform_12(%arg0: i32) -> (i32, i32) {
    %c0_i32 = arith.constant 0 : i32
    %c0_i32_0 = arith.constant 0 : i32
    %c0_i32_1 = arith.constant 0 : i32
    return %c0_i32, %c0_i32_0 : i32, i32
  }
}

</mosaic_0001>

<llo_original>
// kernel: double_ds_conv.1
$region0: #{double_ds_conv.1}
  #allocation0 [shape = 'u32[]', space=smem, size = 0x4, offset = 0x4, fixed_abs, tag = 'smem constant byte address 0x4 - core index']
  #allocation1 [shape = 'u32[144,128]{1,0:T(1,128)}', space=vmem, size = 0x12000, scoped, tag = 'internal scratch']
  %s0 = inlined_call_operand.vmem [shape: f32[32,128], index: 0, kind: input, shape index: {}]
  %s1 = inlined_call_operand.vmem [shape: f32[32,1], index: 1, kind: input, shape index: {}]
  %s2 = inlined_call_operand.vmem [shape: f32[32,1], index: 2, kind: input, shape index: {}]
  %s3 = inlined_call_operand.vmem [shape: f32[3,3,128], index: 3, kind: input, shape index: {}]
  %s4 = inlined_call_operand.vmem [shape: f32[128,128], index: 4, kind: input, shape index: {}]
  %s5 = inlined_call_operand.vmem [shape: f32[1,128], index: 5, kind: input, shape index: {}]
  %s6 = inlined_call_operand.vmem [shape: f32[1,128], index: 6, kind: input, shape index: {}]
  %s7 = inlined_call_operand.vmem [shape: f32[3,3,128], index: 7, kind: input, shape index: {}]
  %s8 = inlined_call_operand.vmem [shape: f32[128,128], index: 8, kind: input, shape index: {}]
  %s9 = inlined_call_operand.vmem [shape: f32[1,128], index: 9, kind: input, shape index: {}]
  %s10 = inlined_call_operand.vmem [shape: f32[1,128], index: 10, kind: input, shape index: {}]
  %s11 = inlined_call_operand.vmem [shape: f32[128,128], index: 11, kind: input, shape index: {}]
  %s12 = inlined_call_operand.vmem [shape: f32[32,128], index: 12, kind: output, shape index: {}]
  %s13 = sld [smem:[#allocation0]]
  $region58: #{double_ds_conv.1} parent=0
    _
  %s15 = ssub.s32 1, %s13
  %s16 = scalar_select 0, %s15, %s13
  // Predicated region
  $region2: #{double_ds_conv.1} parent=0 // pred_check
    _
  $region3: #{double_ds_conv.1} parent=0 // pred_check_branch
    %18 = sbr.rel (0) target = $region5
  $region4: #{double_ds_conv.1} parent=0 // pred_region
    _
  $region5: #{double_ds_conv.1} parent=0 // pred_fallthru
    _
  // Predicated region
  $region6: #{double_ds_conv.1} parent=0 // pred_check
    _
  $region7: #{double_ds_conv.1} parent=0 // pred_check_branch
    %20 = sbr.rel (0) target = $region9
  $region8: #{double_ds_conv.1} parent=0 // pred_region
    _
  $region9: #{double_ds_conv.1} parent=0 // pred_fallthru
    _
  // Predicated region
  $region10: #{double_ds_conv.1} parent=0 // pred_check
    _
  $region11: #{double_ds_conv.1} parent=0 // pred_check_branch
    %22 = sbr.rel (0) target = $region13
  $region12: #{double_ds_conv.1} parent=0 // pred_region
    _
  $region13: #{double_ds_conv.1} parent=0 // pred_fallthru
    _
  // Predicated region
  $region14: #{double_ds_conv.1} parent=0 // pred_check
    _
  $region15: #{double_ds_conv.1} parent=0 // pred_check_branch
    %24 = sbr.rel (0) target = $region17
  $region16: #{double_ds_conv.1} parent=0 // pred_region
    _
  $region17: #{double_ds_conv.1} parent=0 // pred_fallthru
    _
  // Predicated region
  $region18: #{double_ds_conv.1} parent=0 // pred_check
    _
  $region19: #{double_ds_conv.1} parent=0 // pred_check_branch
    %26 = sbr.rel (0) target = $region21
  $region20: #{double_ds_conv.1} parent=0 // pred_region
    _
  $region21: #{double_ds_conv.1} parent=0 // pred_fallthru
    _
  // Predicated region
  $region22: #{double_ds_conv.1} parent=0 // pred_check
    _
  $region23: #{double_ds_conv.1} parent=0 // pred_check_branch
    %28 = sbr.rel (0) target = $region25
  $region24: #{double_ds_conv.1} parent=0 // pred_region
    _
  $region25: #{double_ds_conv.1} parent=0 // pred_fallthru
    _
  // Predicated region
  $region26: #{double_ds_conv.1} parent=0 // pred_check
    _
  $region27: #{double_ds_conv.1} parent=0 // pred_check_branch
    %30 = sbr.rel (0) target = $region29
  $region28: #{double_ds_conv.1} parent=0 // pred_region
    _
  $region29: #{double_ds_conv.1} parent=0 // pred_fallthru
    _
  // Predicated region
  $region30: #{double_ds_conv.1} parent=0 // pred_check
    _
  $region31: #{double_ds_conv.1} parent=0 // pred_check_branch
    %32 = sbr.rel (0) target = $region33
  $region32: #{double_ds_conv.1} parent=0 // pred_region
    _
  $region33: #{double_ds_conv.1} parent=0 // pred_fallthru
    _
  // Predicated region
  $region34: #{double_ds_conv.1} parent=0 // pred_check
    _
  $region35: #{double_ds_conv.1} parent=0 // pred_check_branch
    %34 = sbr.rel (0) target = $region37
  $region36: #{double_ds_conv.1} parent=0 // pred_region
    _
  $region37: #{double_ds_conv.1} parent=0 // pred_fallthru
    _
  // Predicated region
  $region38: #{double_ds_conv.1} parent=0 // pred_check
    _
  $region39: #{double_ds_conv.1} parent=0 // pred_check_branch
    %36 = sbr.rel (0) target = $region41
  $region40: #{double_ds_conv.1} parent=0 // pred_region
    _
  $region41: #{double_ds_conv.1} parent=0 // pred_fallthru
    _
  // Predicated region
  $region42: #{double_ds_conv.1} parent=0 // pred_check
    _
  $region43: #{double_ds_conv.1} parent=0 // pred_check_branch
    %38 = sbr.rel (0) target = $region45
  $region44: #{double_ds_conv.1} parent=0 // pred_region
    _
  $region45: #{double_ds_conv.1} parent=0 // pred_fallthru
    _
  // Predicated region
  $region46: #{double_ds_conv.1} parent=0 // pred_check
    _
  $region47: #{double_ds_conv.1} parent=0 // pred_check_branch
    %40 = sbr.rel (0) target = $region49
  $region48: #{double_ds_conv.1} parent=0 // pred_region
    _
  $region49: #{double_ds_conv.1} parent=0 // pred_fallthru
    _
  %v41 = vlaneseq
  %v42 = vand.u32 %v41, 127
  %v43 = vlaneseq
  %v44 = vshrl.u32 %v43, 7
  %v45 = vld [vmem:[%s1] sm:$0xff]
  %v46 = vld [vmem:[%s1 + $0x8] sm:$0xff]
  %v47 = vld [vmem:[%s1 + $0x10] sm:$0xff]
  %v48 = vld [vmem:[%s1 + $0x18] sm:$0xff]
  %v49 = vld [vmem:[%s2] sm:$0xff]
  %v50 = vld [vmem:[%s2 + $0x8] sm:$0xff]
  %v51 = vld [vmem:[%s2 + $0x10] sm:$0xff]
  %v52 = vld [vmem:[%s2 + $0x18] sm:$0xff]
  %v53 = vld [vmem:[%s0] sm:$0xff]
  %v54 = vld [vmem:[%s0 + $0x8] sm:$0xff]
  %v55 = vld [vmem:[%s0 + $0x10] sm:$0xff]
  %v56 = vld [vmem:[%s0 + $0x18] sm:$0xff]
  %v57 = vld [vmem:[%s3] sm:$0x7]
  %v58 = vld [vmem:[%s3 + $0x4] sm:$0x7]
  %v59 = vld [vmem:[%s3 + $0x8] sm:$0x7]
  %vm60 = vcmp.ge.s32.totalorder %v42, 4
  %61 = vrot.lane.b32.xlu0 %v53, 4
  %v62 = vpop.permute.xlu0 %61
  %63 = vrot.lane.b32.xlu0 %v54, 4
  %v64 = vpop.permute.xlu0 %63
  %65 = vrot.lane.b32.xlu0 %v55, 4
  %v66 = vpop.permute.xlu0 %65
  %67 = vrot.lane.b32.xlu0 %v56, 4
  %v68 = vpop.permute.xlu0 %67
  %v69 = vsel %vm60, %v62, 0.0
  %v70 = vsel %vm60, %v64, 0.0
  %v71 = vsel %vm60, %v66, 0.0
  %v72 = vsel %vm60, %v68, 0.0
  %vm73 = vcmp.lt.s32.totalorder %v42, 60
  %74 = vrot.lane.b32.xlu0 %v53, 124
  %v75 = vpop.permute.xlu0 %74
  %76 = vrot.lane.b32.xlu0 %v54, 124
  %v77 = vpop.permute.xlu0 %76
  %78 = vrot.lane.b32.xlu0 %v55, 124
  %v79 = vpop.permute.xlu0 %78
  %80 = vrot.lane.b32.xlu0 %v56, 124
  %v81 = vpop.permute.xlu0 %80
  %v82 = vsel %vm73, %v75, 0.0
  %v83 = vsel %vm73, %v77, 0.0
  %v84 = vsel %vm73, %v79, 0.0
  %v85 = vsel %vm73, %v81, 0.0
  %v86 = vrot.slane %v69, 7
  %v87 = vrot.slane %v70, 7
  %v88 = vrot.slane %v71, 7
  %v89 = vrot.slane %v72, 7
  %vm90 = vcmp.lt.s32.totalorder %v44, 1
  %v91 = vsel %vm90, %v88, %v89
  %v92 = vsel %vm90, %v87, %v88
  %v93 = vsel %vm90, %v86, %v87
  %v94 = vsel %vm90, %v89, %v86
  %96 = vset.pattern.permute.xlu0 0
  %97 = vperm.xlu0 %96, %v45
  %v98 = vpop.permute.xlu0 %97
  %101 = vset.pattern.permute.xlu0 0
  %102 = vperm.xlu0 %101, %v46
  %v103 = vpop.permute.xlu0 %102
  %106 = vset.pattern.permute.xlu0 0
  %107 = vperm.xlu0 %106, %v47
  %v108 = vpop.permute.xlu0 %107
  %111 = vset.pattern.permute.xlu0 0
  %112 = vperm.xlu0 %111, %v48
  %v113 = vpop.permute.xlu0 %112
  %v115 = vmul.f32 %v94, %v98
  %v116 = vmul.f32 %v93, %v103
  %v117 = vmul.f32 %v92, %v108
  %v118 = vmul.f32 %v91, %v113
  %v119 = vrot.slane %v69, 1
  %v120 = vrot.slane %v70, 1
  %v121 = vrot.slane %v71, 1
  %v122 = vrot.slane %v72, 1
  %vm123 = vcmp.lt.s32.totalorder %v44, 7
  %v124 = vsel %vm123, %v121, %v122
  %v125 = vsel %vm123, %v120, %v121
  %v126 = vsel %vm123, %v119, %v120
  %v127 = vsel %vm123, %v122, %v119
  %129 = vset.pattern.permute.xlu0 0
  %130 = vperm.xlu0 %129, %v49
  %v131 = vpop.permute.xlu0 %130
  %134 = vset.pattern.permute.xlu0 0
  %135 = vperm.xlu0 %134, %v50
  %v136 = vpop.permute.xlu0 %135
  %139 = vset.pattern.permute.xlu0 0
  %140 = vperm.xlu0 %139, %v51
  %v141 = vpop.permute.xlu0 %140
  %144 = vset.pattern.permute.xlu0 0
  %145 = vperm.xlu0 %144, %v52
  %v146 = vpop.permute.xlu0 %145
  %v148 = vmul.f32 %v126, %v131
  %v149 = vmul.f32 %v125, %v136
  %v150 = vmul.f32 %v124, %v141
  %v151 = vmul.f32 %v127, %v146
  %v152 = vlaneseq
  %v153 = vshrl.u32 %v152, 7
  %v154 = vsub.s32 0, %v153
  %v155 = vrot.slane %v57, %v154
  %v156 = vmul.f32 %v115, %v155
  %v157 = vmul.f32 %v116, %v155
  %v158 = vmul.f32 %v117, %v155
  %v159 = vmul.f32 %v118, %v155
  %v160 = vlaneseq
  %v161 = vshrl.u32 %v160, 7
  %v162 = vsub.s32 0, %v161
  %v163 = vrot.slane %v58, %v162
  %v164 = vmul.f32 %v69, %v163
  %v165 = vmul.f32 %v70, %v163
  %v166 = vmul.f32 %v71, %v163
  %v167 = vmul.f32 %v72, %v163
  %v168 = vadd.f32 %v156, %v164
  %v169 = vadd.f32 %v157, %v165
  %v170 = vadd.f32 %v158, %v166
  %v171 = vadd.f32 %v159, %v167
  %v172 = vlaneseq
  %v173 = vshrl.u32 %v172, 7
  %v174 = vsub.s32 0, %v173
  %v175 = vrot.slane %v59, %v174
  %v176 = vmul.f32 %v148, %v175
  %v177 = vmul.f32 %v149, %v175
  %v178 = vmul.f32 %v150, %v175
  %v179 = vmul.f32 %v151, %v175
  %v180 = vadd.f32 %v168, %v176
  %v181 = vadd.f32 %v169, %v177
  %v182 = vadd.f32 %v170, %v178
  %v183 = vadd.f32 %v171, %v179
  %v184 = vrot.slane %v53, 7
  %v185 = vrot.slane %v54, 7
  %v186 = vrot.slane %v55, 7
  %v187 = vrot.slane %v56, 7
  %v188 = vsel %vm90, %v186, %v187
  %v189 = vsel %vm90, %v185, %v186
  %v190 = vsel %vm90, %v184, %v185
  %v191 = vsel %vm90, %v187, %v184
  %v192 = vmul.f32 %v191, %v98
  %v193 = vmul.f32 %v190, %v103
  %v194 = vmul.f32 %v189, %v108
  %v195 = vmul.f32 %v188, %v113
  %v196 = vrot.slane %v53, 1
  %v197 = vrot.slane %v54, 1
  %v198 = vrot.slane %v55, 1
  %v199 = vrot.slane %v56, 1
  %v200 = vsel %vm123, %v198, %v199
  %v201 = vsel %vm123, %v197, %v198
  %v202 = vsel %vm123, %v196, %v197
  %v203 = vsel %vm123, %v199, %v196
  %v204 = vmul.f32 %v202, %v131
  %v205 = vmul.f32 %v201, %v136
  %v206 = vmul.f32 %v200, %v141
  %v207 = vmul.f32 %v203, %v146
  %v208 = vlaneseq
  %v209 = vshrl.u32 %v208, 7
  %v210 = vsub.s32 1, %v209
  %v211 = vrot.slane %v57, %v210
  %v212 = vmul.f32 %v192, %v211
  %v213 = vmul.f32 %v193, %v211
  %v214 = vmul.f32 %v194, %v211
  %v215 = vmul.f32 %v195, %v211
  %v216 = vadd.f32 %v180, %v212
  %v217 = vadd.f32 %v181, %v213
  %v218 = vadd.f32 %v182, %v214
  %v219 = vadd.f32 %v183, %v215
  %v220 = vlaneseq
  %v221 = vshrl.u32 %v220, 7
  %v222 = vsub.s32 1, %v221
  %v223 = vrot.slane %v58, %v222
  %v224 = vmul.f32 %v53, %v223
  %v225 = vmul.f32 %v54, %v223
  %v226 = vmul.f32 %v55, %v223
  %v227 = vmul.f32 %v56, %v223
  %v228 = vadd.f32 %v216, %v224
  %v229 = vadd.f32 %v217, %v225
  %v230 = vadd.f32 %v218, %v226
  %v231 = vadd.f32 %v219, %v227
  %v232 = vlaneseq
  %v233 = vshrl.u32 %v232, 7
  %v234 = vsub.s32 1, %v233
  %v235 = vrot.slane %v59, %v234
  %v236 = vmul.f32 %v204, %v235
  %v237 = vmul.f32 %v205, %v235
  %v238 = vmul.f32 %v206, %v235
  %v239 = vmul.f32 %v207, %v235
  %v240 = vadd.f32 %v228, %v236
  %v241 = vadd.f32 %v229, %v237
  %v242 = vadd.f32 %v230, %v238
  %v243 = vadd.f32 %v231, %v239
  %v244 = vrot.slane %v82, 7
  %v245 = vrot.slane %v83, 7
  %v246 = vrot.slane %v84, 7
  %v247 = vrot.slane %v85, 7
  %v248 = vsel %vm90, %v246, %v247
  %v249 = vsel %vm90, %v245, %v246
  %v250 = vsel %vm90, %v244, %v245
  %v251 = vsel %vm90, %v247, %v244
  %v252 = vmul.f32 %v251, %v98
  %v253 = vmul.f32 %v250, %v103
  %v254 = vmul.f32 %v249, %v108
  %v255 = vmul.f32 %v248, %v113
  %v256 = vrot.slane %v82, 1
  %v257 = vrot.slane %v83, 1
  %v258 = vrot.slane %v84, 1
  %v259 = vrot.slane %v85, 1
  %v260 = vsel %vm123, %v258, %v259
  %v261 = vsel %vm123, %v257, %v258
  %v262 = vsel %vm123, %v256, %v257
  %v263 = vsel %vm123, %v259, %v256
  %v264 = vmul.f32 %v262, %v131
  %v265 = vmul.f32 %v261, %v136
  %v266 = vmul.f32 %v260, %v141
  %v267 = vmul.f32 %v263, %v146
  %v268 = vlaneseq
  %v269 = vshrl.u32 %v268, 7
  %v270 = vsub.s32 2, %v269
  %v271 = vrot.slane %v57, %v270
  %v272 = vmul.f32 %v252, %v271
  %v273 = vmul.f32 %v253, %v271
  %v274 = vmul.f32 %v254, %v271
  %v275 = vmul.f32 %v255, %v271
  %v276 = vadd.f32 %v240, %v272
  %v277 = vadd.f32 %v241, %v273
  %v278 = vadd.f32 %v242, %v274
  %v279 = vadd.f32 %v243, %v275
  %v280 = vlaneseq
  %v281 = vshrl.u32 %v280, 7
  %v282 = vsub.s32 2, %v281
  %v283 = vrot.slane %v58, %v282
  %v284 = vmul.f32 %v82, %v283
  %v285 = vmul.f32 %v83, %v283
  %v286 = vmul.f32 %v84, %v283
  %v287 = vmul.f32 %v85, %v283
  %v288 = vadd.f32 %v276, %v284
  %v289 = vadd.f32 %v277, %v285
  %v290 = vadd.f32 %v278, %v286
  %v291 = vadd.f32 %v279, %v287
  %v292 = vlaneseq
  %v293 = vshrl.u32 %v292, 7
  %v294 = vsub.s32 2, %v293
  %v295 = vrot.slane %v59, %v294
  %v296 = vmul.f32 %v264, %v295
  %v297 = vmul.f32 %v265, %v295
  %v298 = vmul.f32 %v266, %v295
  %v299 = vmul.f32 %v267, %v295
  %v300 = vadd.f32 %v288, %v296
  %v301 = vadd.f32 %v289, %v297
  %v302 = vadd.f32 %v290, %v298
  %v303 = vadd.f32 %v291, %v299
  %v304 = vld [vmem:[%s4] sm:$0xff]
  %v305 = vld [vmem:[%s4 + $0x8] sm:$0xff]
  %v306 = vld [vmem:[%s4 + $0x10] sm:$0xff]
  %v307 = vld [vmem:[%s4 + $0x18] sm:$0xff]
  %v308 = vld [vmem:[%s4 + $0x20] sm:$0xff]
  %v309 = vld [vmem:[%s4 + $0x28] sm:$0xff]
  %v310 = vld [vmem:[%s4 + $0x30] sm:$0xff]
  %v311 = vld [vmem:[%s4 + $0x38] sm:$0xff]
  %v312 = vld [vmem:[%s4 + $0x40] sm:$0xff]
  %v313 = vld [vmem:[%s4 + $0x48] sm:$0xff]
  %v314 = vld [vmem:[%s4 + $0x50] sm:$0xff]
  %v315 = vld [vmem:[%s4 + $0x58] sm:$0xff]
  %v316 = vld [vmem:[%s4 + $0x60] sm:$0xff]
  %v317 = vld [vmem:[%s4 + $0x68] sm:$0xff]
  %v318 = vld [vmem:[%s4 + $0x70] sm:$0xff]
  %v319 = vld [vmem:[%s4 + $0x78] sm:$0xff]
  %320 = vmatprep.subr.mxu0 0.0
  %321 = vmatpush1.msra.mxu0 %v319
  %322 = vmatprep.subr.mxu0 0.0
  %323 = vmatpush1.msra.mxu0 %v318
  %324 = vmatprep.subr.mxu0 0.0
  %325 = vmatpush1.msra.mxu0 %v317
  %326 = vmatprep.subr.mxu0 0.0
  %327 = vmatpush1.msra.mxu0 %v316
  %328 = vmatprep.subr.mxu0 0.0
  %329 = vmatpush1.msra.mxu0 %v315
  %330 = vmatprep.subr.mxu0 0.0
  %331 = vmatpush1.msra.mxu0 %v314
  %332 = vmatprep.subr.mxu0 0.0
  %333 = vmatpush1.msra.mxu0 %v313
  %334 = vmatprep.subr.mxu0 0.0
  %335 = vmatpush1.msra.mxu0 %v312
  %336 = vmatprep.subr.mxu0 0.0
  %337 = vmatpush1.msra.mxu0 %v311
  %338 = vmatprep.subr.mxu0 0.0
  %339 = vmatpush1.msra.mxu0 %v310
  %340 = vmatprep.subr.mxu0 0.0
  %341 = vmatpush1.msra.mxu0 %v309
  %342 = vmatprep.subr.mxu0 0.0
  %343 = vmatpush1.msra.mxu0 %v308
  %344 = vmatprep.subr.mxu0 0.0
  %345 = vmatpush1.msra.mxu0 %v307
  %346 = vmatprep.subr.mxu0 0.0
  %347 = vmatpush1.msra.mxu0 %v306
  %348 = vmatprep.subr.mxu0 0.0
  %349 = vmatpush1.msra.mxu0 %v305
  %350 = vmatprep.subr.mxu0 0.0
  %351 = vmatpush1.msra.mxu0 %v304
  %352 = vmatprep.subr.mxu0 0.0
  %353 = vmatpush2.msra.mxu0 0.0
  %354 = vmatprep.subr.mxu0 0.0
  %355 = vmatpush2.msra.mxu0 0.0
  %356 = vmatprep.subr.mxu0 0.0
  %357 = vmatpush2.msra.mxu0 0.0
  %358 = vmatprep.subr.mxu0 0.0
  %359 = vmatpush2.msra.mxu0 0.0
  %360 = vmatprep.subr.mxu0 0.0
  %361 = vmatpush2.msra.mxu0 0.0
  %362 = vmatprep.subr.mxu0 0.0
  %363 = vmatpush2.msra.mxu0 0.0
  %364 = vmatprep.subr.mxu0 0.0
  %365 = vmatpush2.msra.mxu0 0.0
  %366 = vmatprep.subr.mxu0 0.0
  %367 = vmatpush2.msra.mxu0 0.0
  %368 = vmatprep.subr.mxu0 0.0
  %369 = vmatpush2.msra.mxu0 0.0
  %370 = vmatprep.subr.mxu0 0.0
  %371 = vmatpush2.msra.mxu0 0.0
  %372 = vmatprep.subr.mxu0 0.0
  %373 = vmatpush2.msra.mxu0 0.0
  %374 = vmatprep.subr.mxu0 0.0
  %375 = vmatpush2.msra.mxu0 0.0
  %376 = vmatprep.subr.mxu0 0.0
  %377 = vmatpush2.msra.mxu0 0.0
  %378 = vmatprep.subr.mxu0 0.0
  %379 = vmatpush2.msra.mxu0 0.0
  %380 = vmatprep.subr.mxu0 0.0
  %381 = vmatpush2.msra.mxu0 0.0
  %382 = vmatprep.subr.mxu0 0.0
  %383 = vmatpush2.msra.mxu0 0.0
  %384 = vmatprep.mubr.f32.mxu0 0.0
  %385 = vmatmul.mubr.f32.gmra.mxu0 %v300
  %v386 = vpop.f32.mrf.mxu0
  %v387 = vadd.f32 0.0, %v386
  %v388 = vpop.f32.mrf.mxu0
  %389 = vmatprep.mubr.f32.mxu0 0.0
  %390 = vmatmul.mubr.f32.gmra.mxu0 %v301
  %v391 = vpop.f32.mrf.mxu0
  %v392 = vadd.f32 0.0, %v391
  %v393 = vpop.f32.mrf.mxu0
  %394 = vmatprep.mubr.f32.mxu0 0.0
  %395 = vmatmul.mubr.f32.gmra.mxu0 %v302
  %v396 = vpop.f32.mrf.mxu0
  %v397 = vadd.f32 0.0, %v396
  %v398 = vpop.f32.mrf.mxu0
  %399 = vmatprep.mubr.f32.mxu0 0.0
  %400 = vmatmul.mubr.f32.gmra.mxu0 %v303
  %v401 = vpop.f32.mrf.mxu0
  %v402 = vadd.f32 0.0, %v401
  %v403 = vpop.f32.mrf.mxu0
  %404 = vdwg.mxu0
  %v405 = vadd.f32 %v387, %v392
  %v406 = vadd.f32 %v405, %v397
  %v407 = vadd.f32 %v406, %v402
  %v408 = vrot.slane %v407, 4
  %v409 = vadd.f32 %v407, %v408
  %v410 = vrot.slane %v409, 2
  %v411 = vadd.f32 %v409, %v410
  %v412 = vrot.slane %v411, 1
  %v413 = vadd.f32 %v411, %v412
  %v414 = vmul.f32 %v387, %v387
  %v415 = vmul.f32 %v392, %v392
  %v416 = vmul.f32 %v397, %v397
  %v417 = vmul.f32 %v402, %v402
  %v418 = vadd.f32 %v414, %v415
  %v419 = vadd.f32 %v418, %v416
  %v420 = vadd.f32 %v419, %v417
  %v421 = vrot.slane %v420, 4
  %v422 = vadd.f32 %v420, %v421
  %v423 = vrot.slane %v422, 2
  %v424 = vadd.f32 %v422, %v423
  %v425 = vrot.slane %v424, 1
  %v426 = vadd.f32 %v424, %v425
  %vm427 = vcmp.eq.s32.totalorder %v44, 0
  %v428 = vsel %vm427, %v413, %v426
  %v429 = vld [vmem:[%s11] sm:$0xff]
  %v430 = vld [vmem:[%s11 + $0x8] sm:$0xff]
  %v431 = vld [vmem:[%s11 + $0x10] sm:$0xff]
  %v432 = vld [vmem:[%s11 + $0x18] sm:$0xff]
  %v433 = vld [vmem:[%s11 + $0x20] sm:$0xff]
  %v434 = vld [vmem:[%s11 + $0x28] sm:$0xff]
  %v435 = vld [vmem:[%s11 + $0x30] sm:$0xff]
  %v436 = vld [vmem:[%s11 + $0x38] sm:$0xff]
  %v437 = vld [vmem:[%s11 + $0x40] sm:$0xff]
  %v438 = vld [vmem:[%s11 + $0x48] sm:$0xff]
  %v439 = vld [vmem:[%s11 + $0x50] sm:$0xff]
  %v440 = vld [vmem:[%s11 + $0x58] sm:$0xff]
  %v441 = vld [vmem:[%s11 + $0x60] sm:$0xff]
  %v442 = vld [vmem:[%s11 + $0x68] sm:$0xff]
  %v443 = vld [vmem:[%s11 + $0x70] sm:$0xff]
  %v444 = vld [vmem:[%s11 + $0x78] sm:$0xff]
  %445 = vmatprep.subr.mxu0 0.0
  %446 = vmatpush1.msra.mxu0 %v444
  %447 = vmatprep.subr.mxu0 0.0
  %448 = vmatpush1.msra.mxu0 %v443
  %449 = vmatprep.subr.mxu0 0.0
  %450 = vmatpush1.msra.mxu0 %v442
  %451 = vmatprep.subr.mxu0 0.0
  %452 = vmatpush1.msra.mxu0 %v441
  %453 = vmatprep.subr.mxu0 0.0
  %454 = vmatpush1.msra.mxu0 %v440
  %455 = vmatprep.subr.mxu0 0.0
  %456 = vmatpush1.msra.mxu0 %v439
  %457 = vmatprep.subr.mxu0 0.0
  %458 = vmatpush1.msra.mxu0 %v438
  %459 = vmatprep.subr.mxu0 0.0
  %460 = vmatpush1.msra.mxu0 %v437
  %461 = vmatprep.subr.mxu0 0.0
  %462 = vmatpush1.msra.mxu0 %v436
  %463 = vmatprep.subr.mxu0 0.0
  %464 = vmatpush1.msra.mxu0 %v435
  %465 = vmatprep.subr.mxu0 0.0
  %466 = vmatpush1.msra.mxu0 %v434
  %467 = vmatprep.subr.mxu0 0.0
  %468 = vmatpush1.msra.mxu0 %v433
  %469 = vmatprep.subr.mxu0 0.0
  %470 = vmatpush1.msra.mxu0 %v432
  %471 = vmatprep.subr.mxu0 0.0
  %472 = vmatpush1.msra.mxu0 %v431
  %473 = vmatprep.subr.mxu0 0.0
  %474 = vmatpush1.msra.mxu0 %v430
  %475 = vmatprep.subr.mxu0 0.0
  %476 = vmatpush1.msra.mxu0 %v429
  %477 = vmatprep.subr.mxu0 0.0
  %478 = vmatpush2.msra.mxu0 0.0
  %479 = vmatprep.subr.mxu0 0.0
  %480 = vmatpush2.msra.mxu0 0.0
  %481 = vmatprep.subr.mxu0 0.0
  %482 = vmatpush2.msra.mxu0 0.0
  %483 = vmatprep.subr.mxu0 0.0
  %484 = vmatpush2.msra.mxu0 0.0
  %485 = vmatprep.subr.mxu0 0.0
  %486 = vmatpush2.msra.mxu0 0.0
  %487 = vmatprep.subr.mxu0 0.0
  %488 = vmatpush2.msra.mxu0 0.0
  %489 = vmatprep.subr.mxu0 0.0
  %490 = vmatpush2.msra.mxu0 0.0
  %491 = vmatprep.subr.mxu0 0.0
  %492 = vmatpush2.msra.mxu0 0.0
  %493 = vmatprep.subr.mxu0 0.0
  %494 = vmatpush2.msra.mxu0 0.0
  %495 = vmatprep.subr.mxu0 0.0
  %496 = vmatpush2.msra.mxu0 0.0
  %497 = vmatprep.subr.mxu0 0.0
  %498 = vmatpush2.msra.mxu0 0.0
  %499 = vmatprep.subr.mxu0 0.0
  %500 = vmatpush2.msra.mxu0 0.0
  %501 = vmatprep.subr.mxu0 0.0
  %502 = vmatpush2.msra.mxu0 0.0
  %503 = vmatprep.subr.mxu0 0.0
  %504 = vmatpush2.msra.mxu0 0.0
  %505 = vmatprep.subr.mxu0 0.0
  %506 = vmatpush2.msra.mxu0 0.0
  %507 = vmatprep.subr.mxu0 0.0
  %508 = vmatpush2.msra.mxu0 0.0
  %509 = vmatprep.mubr.f32.mxu0 0.0
  %510 = vmatmul.mubr.f32.gmra.mxu0 %v428
  %v511 = vpop.f32.mrf.mxu0
  %v512 = vadd.f32 0.0, %v511
  %v513 = vpop.f32.mrf.mxu0
  %514 = vdwg.mxu0
  %v515 = vmul.f32 %v512, 0.001953125
  %v516 = vmul.f32 %v515, %v515
  %v518 = vrot.slane %v516, 7
  %v520 = vsub.f32 %v515, %v518
  %v521 = vmax.f32 %v520, 0.0
  %v522 = vld [vmem:[%s5] sm:$0x1]
  %v523 = vadd.f32 %v521, 1e-05
  %v524 = vrsqrt.pop %v523
  %v527 = vunpack.c.l.s4 1966171168
  %v528 = vunpack.c.0.s8 %v527
  %v529 = vlaneseq
  %v530 = vshrl.u32 %v529, 7
  %v531 = vsub.s32 %v528, %v530
  %v532 = vrot.slane %v524, %v531
  %v533 = vcombine.high %v532, %v532
  %v535 = vunpack.c.l.s4 1966171168
  %v536 = vunpack.c.0.s8 %v535
  %v537 = vlaneseq
  %v538 = vshrl.u32 %v537, 7
  %v539 = vsub.s32 %v536, %v538
  %v540 = vrot.slane %v533, %v539
  %v542 = vmul.f32 %v522, %v540
  %v543 = vld [vmem:[%s6] sm:$0x1]
  %v544 = vmul.f32 %v515, %v542
  %v545 = vsub.f32 %v543, %v544
  %v547 = vlaneseq
  %v548 = vshrl.u32 %v547, 7
  %v549 = vsub.s32 0, %v548
  %v550 = vrot.slane %v542, %v549
  %v552 = vmul.f32 %v387, %v550
  %v553 = vmul.f32 %v392, %v550
  %v554 = vmul.f32 %v397, %v550
  %v555 = vmul.f32 %v402, %v550
  %v557 = vlaneseq
  %v558 = vshrl.u32 %v557, 7
  %v559 = vsub.s32 0, %v558
  %v560 = vrot.slane %v545, %v559
  %v562 = vadd.f32 %v552, %v560
  %v563 = vadd.f32 %v553, %v560
  %v564 = vadd.f32 %v554, %v560
  %v565 = vadd.f32 %v555, %v560
  %v566 = vmax.f32 %v562, 0.0
  %v567 = vmax.f32 %v563, 0.0
  %v568 = vmax.f32 %v564, 0.0
  %v569 = vmax.f32 %v565, 0.0
  %v570 = vld [vmem:[%s7] sm:$0x7]
  %v571 = vld [vmem:[%s7 + $0x4] sm:$0x7]
  %v572 = vld [vmem:[%s7 + $0x8] sm:$0x7]
  %vm573 = vcmp.ge.s32.totalorder %v42, 8
  %574 = vrot.lane.b32.xlu0 %v566, 8
  %v575 = vpop.permute.xlu0 %574
  %576 = vrot.lane.b32.xlu0 %v567, 8
  %v577 = vpop.permute.xlu0 %576
  %578 = vrot.lane.b32.xlu0 %v568, 8
  %v579 = vpop.permute.xlu0 %578
  %580 = vrot.lane.b32.xlu0 %v569, 8
  %v581 = vpop.permute.xlu0 %580
  %v582 = vsel %vm573, %v575, 0.0
  %v583 = vsel %vm573, %v577, 0.0
  %v584 = vsel %vm573, %v579, 0.0
  %v585 = vsel %vm573, %v581, 0.0
  %vm586 = vcmp.lt.s32.totalorder %v42, 120
  %587 = vrot.lane.b32.xlu0 %v566, 120
  %v588 = vpop.permute.xlu0 %587
  %589 = vrot.lane.b32.xlu0 %v567, 120
  %v590 = vpop.permute.xlu0 %589
  %591 = vrot.lane.b32.xlu0 %v568, 120
  %v592 = vpop.permute.xlu0 %591
  %593 = vrot.lane.b32.xlu0 %v569, 120
  %v594 = vpop.permute.xlu0 %593
  %v595 = vsel %vm586, %v588, 0.0
  %v596 = vsel %vm586, %v590, 0.0
  %v597 = vsel %vm586, %v592, 0.0
  %v598 = vsel %vm586, %v594, 0.0
  %v599 = vrot.slane %v582, 7
  %v600 = vrot.slane %v583, 7
  %v601 = vrot.slane %v584, 7
  %v602 = vrot.slane %v585, 7
  %v603 = vsel %vm90, %v601, %v602
  %v604 = vsel %vm90, %v600, %v601
  %v605 = vsel %vm90, %v599, %v600
  %v606 = vsel %vm90, %v602, %v599
  %v607 = vmul.f32 %v606, %v98
  %v608 = vmul.f32 %v605, %v103
  %v609 = vmul.f32 %v604, %v108
  %v610 = vmul.f32 %v603, %v113
  %v611 = vrot.slane %v582, 1
  %v612 = vrot.slane %v583, 1
  %v613 = vrot.slane %v584, 1
  %v614 = vrot.slane %v585, 1
  %v615 = vsel %vm123, %v613, %v614
  %v616 = vsel %vm123, %v612, %v613
  %v617 = vsel %vm123, %v611, %v612
  %v618 = vsel %vm123, %v614, %v611
  %v619 = vmul.f32 %v617, %v131
  %v620 = vmul.f32 %v616, %v136
  %v621 = vmul.f32 %v615, %v141
  %v622 = vmul.f32 %v618, %v146
  %v623 = vlaneseq
  %v624 = vshrl.u32 %v623, 7
  %v625 = vsub.s32 0, %v624
  %v626 = vrot.slane %v570, %v625
  %v627 = vmul.f32 %v607, %v626
  %v628 = vmul.f32 %v608, %v626
  %v629 = vmul.f32 %v609, %v626
  %v630 = vmul.f32 %v610, %v626
  %v631 = vlaneseq
  %v632 = vshrl.u32 %v631, 7
  %v633 = vsub.s32 0, %v632
  %v634 = vrot.slane %v571, %v633
  %v635 = vmul.f32 %v582, %v634
  %v636 = vmul.f32 %v583, %v634
  %v637 = vmul.f32 %v584, %v634
  %v638 = vmul.f32 %v585, %v634
  %v639 = vadd.f32 %v627, %v635
  %v640 = vadd.f32 %v628, %v636
  %v641 = vadd.f32 %v629, %v637
  %v642 = vadd.f32 %v630, %v638
  %v643 = vlaneseq
  %v644 = vshrl.u32 %v643, 7
  %v645 = vsub.s32 0, %v644
  %v646 = vrot.slane %v572, %v645
  %v647 = vmul.f32 %v619, %v646
  %v648 = vmul.f32 %v620, %v646
  %v649 = vmul.f32 %v621, %v646
  %v650 = vmul.f32 %v622, %v646
  %v651 = vadd.f32 %v639, %v647
  %v652 = vadd.f32 %v640, %v648
  %v653 = vadd.f32 %v641, %v649
  %v654 = vadd.f32 %v642, %v650
  %v655 = vrot.slane %v566, 7
  %v656 = vrot.slane %v567, 7
  %v657 = vrot.slane %v568, 7
  %v658 = vrot.slane %v569, 7
  %v659 = vsel %vm90, %v657, %v658
  %v660 = vsel %vm90, %v656, %v657
  %v661 = vsel %vm90, %v655, %v656
  %v662 = vsel %vm90, %v658, %v655
  %v663 = vmul.f32 %v662, %v98
  %v664 = vmul.f32 %v661, %v103
  %v665 = vmul.f32 %v660, %v108
  %v666 = vmul.f32 %v659, %v113
  %v667 = vrot.slane %v566, 1
  %v668 = vrot.slane %v567, 1
  %v669 = vrot.slane %v568, 1
  %v670 = vrot.slane %v569, 1
  %v671 = vsel %vm123, %v669, %v670
  %v672 = vsel %vm123, %v668, %v669
  %v673 = vsel %vm123, %v667, %v668
  %v674 = vsel %vm123, %v670, %v667
  %v675 = vmul.f32 %v673, %v131
  %v676 = vmul.f32 %v672, %v136
  %v677 = vmul.f32 %v671, %v141
  %v678 = vmul.f32 %v674, %v146
  %v679 = vlaneseq
  %v680 = vshrl.u32 %v679, 7
  %v681 = vsub.s32 1, %v680
  %v682 = vrot.slane %v570, %v681
  %v683 = vmul.f32 %v663, %v682
  %v684 = vmul.f32 %v664, %v682
  %v685 = vmul.f32 %v665, %v682
  %v686 = vmul.f32 %v666, %v682
  %v687 = vadd.f32 %v651, %v683
  %v688 = vadd.f32 %v652, %v684
  %v689 = vadd.f32 %v653, %v685
  %v690 = vadd.f32 %v654, %v686
  %v691 = vlaneseq
  %v692 = vshrl.u32 %v691, 7
  %v693 = vsub.s32 1, %v692
  %v694 = vrot.slane %v571, %v693
  %v695 = vmul.f32 %v566, %v694
  %v696 = vmul.f32 %v567, %v694
  %v697 = vmul.f32 %v568, %v694
  %v698 = vmul.f32 %v569, %v694
  %v699 = vadd.f32 %v687, %v695
  %v700 = vadd.f32 %v688, %v696
  %v701 = vadd.f32 %v689, %v697
  %v702 = vadd.f32 %v690, %v698
  %v703 = vlaneseq
  %v704 = vshrl.u32 %v703, 7
  %v705 = vsub.s32 1, %v704
  %v706 = vrot.slane %v572, %v705
  %v707 = vmul.f32 %v675, %v706
  %v708 = vmul.f32 %v676, %v706
  %v709 = vmul.f32 %v677, %v706
  %v710 = vmul.f32 %v678, %v706
  %v711 = vadd.f32 %v699, %v707
  %v712 = vadd.f32 %v700, %v708
  %v713 = vadd.f32 %v701, %v709
  %v714 = vadd.f32 %v702, %v710
  %v715 = vrot.slane %v595, 7
  %v716 = vrot.slane %v596, 7
  %v717 = vrot.slane %v597, 7
  %v718 = vrot.slane %v598, 7
  %v719 = vsel %vm90, %v717, %v718
  %v720 = vsel %vm90, %v716, %v717
  %v721 = vsel %vm90, %v715, %v716
  %v722 = vsel %vm90, %v718, %v715
  %v723 = vmul.f32 %v722, %v98
  %v724 = vmul.f32 %v721, %v103
  %v725 = vmul.f32 %v720, %v108
  %v726 = vmul.f32 %v719, %v113
  %v727 = vrot.slane %v595, 1
  %v728 = vrot.slane %v596, 1
  %v729 = vrot.slane %v597, 1
  %v730 = vrot.slane %v598, 1
  %v731 = vsel %vm123, %v729, %v730
  %v732 = vsel %vm123, %v728, %v729
  %v733 = vsel %vm123, %v727, %v728
  %v734 = vsel %vm123, %v730, %v727
  %v735 = vmul.f32 %v733, %v131
  %v736 = vmul.f32 %v732, %v136
  %v737 = vmul.f32 %v731, %v141
  %v738 = vmul.f32 %v734, %v146
  %v739 = vlaneseq
  %v740 = vshrl.u32 %v739, 7
  %v741 = vsub.s32 2, %v740
  %v742 = vrot.slane %v570, %v741
  %v743 = vmul.f32 %v723, %v742
  %v744 = vmul.f32 %v724, %v742
  %v745 = vmul.f32 %v725, %v742
  %v746 = vmul.f32 %v726, %v742
  %v747 = vadd.f32 %v711, %v743
  %v748 = vadd.f32 %v712, %v744
  %v749 = vadd.f32 %v713, %v745
  %v750 = vadd.f32 %v714, %v746
  %v751 = vlaneseq
  %v752 = vshrl.u32 %v751, 7
  %v753 = vsub.s32 2, %v752
  %v754 = vrot.slane %v571, %v753
  %v755 = vmul.f32 %v595, %v754
  %v756 = vmul.f32 %v596, %v754
  %v757 = vmul.f32 %v597, %v754
  %v758 = vmul.f32 %v598, %v754
  %v759 = vadd.f32 %v747, %v755
  %v760 = vadd.f32 %v748, %v756
  %v761 = vadd.f32 %v749, %v757
  %v762 = vadd.f32 %v750, %v758
  %v763 = vlaneseq
  %v764 = vshrl.u32 %v763, 7
  %v765 = vsub.s32 2, %v764
  %v766 = vrot.slane %v572, %v765
  %v767 = vmul.f32 %v735, %v766
  %v768 = vmul.f32 %v736, %v766
  %v769 = vmul.f32 %v737, %v766
  %v770 = vmul.f32 %v738, %v766
  %v771 = vadd.f32 %v759, %v767
  %v772 = vadd.f32 %v760, %v768
  %v773 = vadd.f32 %v761, %v769
  %v774 = vadd.f32 %v762, %v770
  %v775 = vld [vmem:[%s8] sm:$0xff]
  %v776 = vld [vmem:[%s8 + $0x8] sm:$0xff]
  %v777 = vld [vmem:[%s8 + $0x10] sm:$0xff]
  %v778 = vld [vmem:[%s8 + $0x18] sm:$0xff]
  %v779 = vld [vmem:[%s8 + $0x20] sm:$0xff]
  %v780 = vld [vmem:[%s8 + $0x28] sm:$0xff]
  %v781 = vld [vmem:[%s8 + $0x30] sm:$0xff]
  %v782 = vld [vmem:[%s8 + $0x38] sm:$0xff]
  %v783 = vld [vmem:[%s8 + $0x40] sm:$0xff]
  %v784 = vld [vmem:[%s8 + $0x48] sm:$0xff]
  %v785 = vld [vmem:[%s8 + $0x50] sm:$0xff]
  %v786 = vld [vmem:[%s8 + $0x58] sm:$0xff]
  %v787 = vld [vmem:[%s8 + $0x60] sm:$0xff]
  %v788 = vld [vmem:[%s8 + $0x68] sm:$0xff]
  %v789 = vld [vmem:[%s8 + $0x70] sm:$0xff]
  %v790 = vld [vmem:[%s8 + $0x78] sm:$0xff]
  %791 = vmatprep.subr.mxu0 0.0
  %792 = vmatpush1.msra.mxu0 %v790
  %793 = vmatprep.subr.mxu0 0.0
  %794 = vmatpush1.msra.mxu0 %v789
  %795 = vmatprep.subr.mxu0 0.0
  %796 = vmatpush1.msra.mxu0 %v788
  %797 = vmatprep.subr.mxu0 0.0
  %798 = vmatpush1.msra.mxu0 %v787
  %799 = vmatprep.subr.mxu0 0.0
  %800 = vmatpush1.msra.mxu0 %v786
  %801 = vmatprep.subr.mxu0 0.0
  %802 = vmatpush1.msra.mxu0 %v785
  %803 = vmatprep.subr.mxu0 0.0
  %804 = vmatpush1.msra.mxu0 %v784
  %805 = vmatprep.subr.mxu0 0.0
  %806 = vmatpush1.msra.mxu0 %v783
  %807 = vmatprep.subr.mxu0 0.0
  %808 = vmatpush1.msra.mxu0 %v782
  %809 = vmatprep.subr.mxu0 0.0
  %810 = vmatpush1.msra.mxu0 %v781
  %811 = vmatprep.subr.mxu0 0.0
  %812 = vmatpush1.msra.mxu0 %v780
  %813 = vmatprep.subr.mxu0 0.0
  %814 = vmatpush1.msra.mxu0 %v779
  %815 = vmatprep.subr.mxu0 0.0
  %816 = vmatpush1.msra.mxu0 %v778
  %817 = vmatprep.subr.mxu0 0.0
  %818 = vmatpush1.msra.mxu0 %v777
  %819 = vmatprep.subr.mxu0 0.0
  %820 = vmatpush1.msra.mxu0 %v776
  %821 = vmatprep.subr.mxu0 0.0
  %822 = vmatpush1.msra.mxu0 %v775
  %823 = vmatprep.subr.mxu0 0.0
  %824 = vmatpush2.msra.mxu0 0.0
  %825 = vmatprep.subr.mxu0 0.0
  %826 = vmatpush2.msra.mxu0 0.0
  %827 = vmatprep.subr.mxu0 0.0
  %828 = vmatpush2.msra.mxu0 0.0
  %829 = vmatprep.subr.mxu0 0.0
  %830 = vmatpush2.msra.mxu0 0.0
  %831 = vmatprep.subr.mxu0 0.0
  %832 = vmatpush2.msra.mxu0 0.0
  %833 = vmatprep.subr.mxu0 0.0
  %834 = vmatpush2.msra.mxu0 0.0
  %835 = vmatprep.subr.mxu0 0.0
  %836 = vmatpush2.msra.mxu0 0.0
  %837 = vmatprep.subr.mxu0 0.0
  %838 = vmatpush2.msra.mxu0 0.0
  %839 = vmatprep.subr.mxu0 0.0
  %840 = vmatpush2.msra.mxu0 0.0
  %841 = vmatprep.subr.mxu0 0.0
  %842 = vmatpush2.msra.mxu0 0.0
  %843 = vmatprep.subr.mxu0 0.0
  %844 = vmatpush2.msra.mxu0 0.0
  %845 = vmatprep.subr.mxu0 0.0
  %846 = vmatpush2.msra.mxu0 0.0
  %847 = vmatprep.subr.mxu0 0.0
  %848 = vmatpush2.msra.mxu0 0.0
  %849 = vmatprep.subr.mxu0 0.0
  %850 = vmatpush2.msra.mxu0 0.0
  %851 = vmatprep.subr.mxu0 0.0
  %852 = vmatpush2.msra.mxu0 0.0
  %853 = vmatprep.subr.mxu0 0.0
  %854 = vmatpush2.msra.mxu0 0.0
  %855 = vmatprep.mubr.f32.mxu0 0.0
  %856 = vmatmul.mubr.f32.gmra.mxu0 %v771
  %v857 = vpop.f32.mrf.mxu0
  %v858 = vadd.f32 0.0, %v857
  %v859 = vpop.f32.mrf.mxu0
  %860 = vmatprep.mubr.f32.mxu0 0.0
  %861 = vmatmul.mubr.f32.gmra.mxu0 %v772
  %v862 = vpop.f32.mrf.mxu0
  %v863 = vadd.f32 0.0, %v862
  %v864 = vpop.f32.mrf.mxu0
  %865 = vmatprep.mubr.f32.mxu0 0.0
  %866 = vmatmul.mubr.f32.gmra.mxu0 %v773
  %v867 = vpop.f32.mrf.mxu0
  %v868 = vadd.f32 0.0, %v867
  %v869 = vpop.f32.mrf.mxu0
  %870 = vmatprep.mubr.f32.mxu0 0.0
  %871 = vmatmul.mubr.f32.gmra.mxu0 %v774
  %v872 = vpop.f32.mrf.mxu0
  %v873 = vadd.f32 0.0, %v872
  %v874 = vpop.f32.mrf.mxu0
  %875 = vdwg.mxu0
  %v876 = vadd.f32 %v858, %v863
  %v877 = vadd.f32 %v876, %v868
  %v878 = vadd.f32 %v877, %v873
  %v879 = vrot.slane %v878, 4
  %v880 = vadd.f32 %v878, %v879
  %v881 = vrot.slane %v880, 2
  %v882 = vadd.f32 %v880, %v881
  %v883 = vrot.slane %v882, 1
  %v884 = vadd.f32 %v882, %v883
  %v885 = vmul.f32 %v858, %v858
  %v886 = vmul.f32 %v863, %v863
  %v887 = vmul.f32 %v868, %v868
  %v888 = vmul.f32 %v873, %v873
  %v889 = vadd.f32 %v885, %v886
  %v890 = vadd.f32 %v889, %v887
  %v891 = vadd.f32 %v890, %v888
  %v892 = vrot.slane %v891, 4
  %v893 = vadd.f32 %v891, %v892
  %v894 = vrot.slane %v893, 2
  %v895 = vadd.f32 %v893, %v894
  %v896 = vrot.slane %v895, 1
  %v897 = vadd.f32 %v895, %v896
  %v898 = vsel %vm427, %v884, %v897
  %899 = vmatprep.subr.mxu0 0.0
  %900 = vmatpush1.msra.mxu0 %v444
  %901 = vmatprep.subr.mxu0 0.0
  %902 = vmatpush1.msra.mxu0 %v443
  %903 = vmatprep.subr.mxu0 0.0
  %904 = vmatpush1.msra.mxu0 %v442
  %905 = vmatprep.subr.mxu0 0.0
  %906 = vmatpush1.msra.mxu0 %v441
  %907 = vmatprep.subr.mxu0 0.0
  %908 = vmatpush1.msra.mxu0 %v440
  %909 = vmatprep.subr.mxu0 0.0
  %910 = vmatpush1.msra.mxu0 %v439
  %911 = vmatprep.subr.mxu0 0.0
  %912 = vmatpush1.msra.mxu0 %v438
  %913 = vmatprep.subr.mxu0 0.0
  %914 = vmatpush1.msra.mxu0 %v437
  %915 = vmatprep.subr.mxu0 0.0
  %916 = vmatpush1.msra.mxu0 %v436
  %917 = vmatprep.subr.mxu0 0.0
  %918 = vmatpush1.msra.mxu0 %v435
  %919 = vmatprep.subr.mxu0 0.0
  %920 = vmatpush1.msra.mxu0 %v434
  %921 = vmatprep.subr.mxu0 0.0
  %922 = vmatpush1.msra.mxu0 %v433
  %923 = vmatprep.subr.mxu0 0.0
  %924 = vmatpush1.msra.mxu0 %v432
  %925 = vmatprep.subr.mxu0 0.0
  %926 = vmatpush1.msra.mxu0 %v431
  %927 = vmatprep.subr.mxu0 0.0
  %928 = vmatpush1.msra.mxu0 %v430
  %929 = vmatprep.subr.mxu0 0.0
  %930 = vmatpush1.msra.mxu0 %v429
  %931 = vmatprep.subr.mxu0 0.0
  %932 = vmatpush2.msra.mxu0 0.0
  %933 = vmatprep.subr.mxu0 0.0
  %934 = vmatpush2.msra.mxu0 0.0
  %935 = vmatprep.subr.mxu0 0.0
  %936 = vmatpush2.msra.mxu0 0.0
  %937 = vmatprep.subr.mxu0 0.0
  %938 = vmatpush2.msra.mxu0 0.0
  %939 = vmatprep.subr.mxu0 0.0
  %940 = vmatpush2.msra.mxu0 0.0
  %941 = vmatprep.subr.mxu0 0.0
  %942 = vmatpush2.msra.mxu0 0.0
  %943 = vmatprep.subr.mxu0 0.0
  %944 = vmatpush2.msra.mxu0 0.0
  %945 = vmatprep.subr.mxu0 0.0
  %946 = vmatpush2.msra.mxu0 0.0
  %947 = vmatprep.subr.mxu0 0.0
  %948 = vmatpush2.msra.mxu0 0.0
  %949 = vmatprep.subr.mxu0 0.0
  %950 = vmatpush2.msra.mxu0 0.0
  %951 = vmatprep.subr.mxu0 0.0
  %952 = vmatpush2.msra.mxu0 0.0
  %953 = vmatprep.subr.mxu0 0.0
  %954 = vmatpush2.msra.mxu0 0.0
  %955 = vmatprep.subr.mxu0 0.0
  %956 = vmatpush2.msra.mxu0 0.0
  %957 = vmatprep.subr.mxu0 0.0
  %958 = vmatpush2.msra.mxu0 0.0
  %959 = vmatprep.subr.mxu0 0.0
  %960 = vmatpush2.msra.mxu0 0.0
  %961 = vmatprep.subr.mxu0 0.0
  %962 = vmatpush2.msra.mxu0 0.0
  %963 = vmatprep.mubr.f32.mxu0 0.0
  %964 = vmatmul.mubr.f32.gmra.mxu0 %v898
  %v965 = vpop.f32.mrf.mxu0
  %v966 = vadd.f32 0.0, %v965
  %v967 = vpop.f32.mrf.mxu0
  %968 = vdwg.mxu0
  %v969 = vmul.f32 %v966, 0.001953125
  %v970 = vmul.f32 %v969, %v969
  %v972 = vrot.slane %v970, 7
  %v974 = vsub.f32 %v969, %v972
  %v975 = vmax.f32 %v974, 0.0
  %v976 = vld [vmem:[%s9] sm:$0x1]
  %v977 = vadd.f32 %v975, 1e-05
  %v978 = vrsqrt.pop %v977
  %v981 = vunpack.c.l.s4 1966171168
  %v982 = vunpack.c.0.s8 %v981
  %v983 = vlaneseq
  %v984 = vshrl.u32 %v983, 7
  %v985 = vsub.s32 %v982, %v984
  %v986 = vrot.slane %v978, %v985
  %v987 = vcombine.high %v986, %v986
  %v989 = vunpack.c.l.s4 1966171168
  %v990 = vunpack.c.0.s8 %v989
  %v991 = vlaneseq
  %v992 = vshrl.u32 %v991, 7
  %v993 = vsub.s32 %v990, %v992
  %v994 = vrot.slane %v987, %v993
  %v996 = vmul.f32 %v976, %v994
  %v997 = vld [vmem:[%s10] sm:$0x1]
  %v998 = vmul.f32 %v969, %v996
  %v999 = vsub.f32 %v997, %v998
  %v1001 = vlaneseq
  %v1002 = vshrl.u32 %v1001, 7
  %v1003 = vsub.s32 0, %v1002
  %v1004 = vrot.slane %v996, %v1003
  %v1006 = vmul.f32 %v858, %v1004
  %v1007 = vmul.f32 %v863, %v1004
  %v1008 = vmul.f32 %v868, %v1004
  %v1009 = vmul.f32 %v873, %v1004
  %v1011 = vlaneseq
  %v1012 = vshrl.u32 %v1011, 7
  %v1013 = vsub.s32 0, %v1012
  %v1014 = vrot.slane %v999, %v1013
  %v1016 = vadd.f32 %v1006, %v1014
  %v1017 = vadd.f32 %v1007, %v1014
  %v1018 = vadd.f32 %v1008, %v1014
  %v1019 = vadd.f32 %v1009, %v1014
  %v1020 = vmax.f32 %v1016, 0.0
  %v1021 = vmax.f32 %v1017, 0.0
  %v1022 = vmax.f32 %v1018, 0.0
  %v1023 = vmax.f32 %v1019, 0.0
  %1024 = vst [vmem:[%s12] sm:$0xff] %v1020
  %1025 = vst [vmem:[%s12 + $0x8] sm:$0xff] %v1021
  %1026 = vst [vmem:[%s12 + $0x10] sm:$0xff] %v1022
  %1027 = vst [vmem:[%s12 + $0x18] sm:$0xff] %v1023
  // Predicated region
  $region50: #{double_ds_conv.1} parent=0 // pred_check
    _
  $region51: #{double_ds_conv.1} parent=0 // pred_check_branch
    %1029 = sbr.rel (0) target = $region53
  $region52: #{double_ds_conv.1} parent=0 // pred_region
    _
  $region53: #{double_ds_conv.1} parent=0 // pred_fallthru
    _
  // Predicated region
  $region54: #{double_ds_conv.1} parent=0 // pred_check
    _
  $region55: #{double_ds_conv.1} parent=0 // pred_check_branch
    %1031 = sbr.rel (0) target = $region57
  $region56: #{double_ds_conv.1} parent=0 // pred_region
    _
  $region57: #{double_ds_conv.1} parent=0 // pred_fallthru
    _

</llo_original>
